<compile_context>
chip_gen: v7x
topology: tpu7x:2x2x1
jax: 0.10.0
libtpu: 0.0.40
codegen_flags: <defaults>
</compile_context>

<pallas_src>
import math

import jax
import jax.numpy as jnp
from jax.experimental import pallas as pl
from jax.experimental.pallas import tpu as pltpu

LANE = 128


def _cdiv(a, b):
    return -(-a // b)


def _round_up(a, b):
    return _cdiv(a, b) * b


def fixed_embedding_table(c_in: int, d_model: int) -> jnp.ndarray:
    """Deterministic sinusoidal table, identical to FixedEmbedding.__init__."""
    position = jnp.arange(c_in, dtype=jnp.float32)[:, None]                 # (c_in, 1)
    div_term = jnp.exp(
        jnp.arange(0, d_model, 2, dtype=jnp.float32)
        * -(math.log(10000.0) / d_model)
    )                                                                       # (d_model//2,)
    w = jnp.zeros((c_in, d_model), dtype=jnp.float32)
    w = w.at[:, 0::2].set(jnp.sin(position * div_term))
    w = w.at[:, 1::2].set(jnp.cos(position * div_term))
    return w


def _plan_layout(sizes):
    """Place each present feature inside the fused table.

    Small features (size <= 128) are bin-packed into shared 128-lane windows;
    large features get their own round_up(size, 128)-lane window.  Returns
    (feats, windows, k_pad) where feats = [(col, size, global_off, win_idx)]
    and windows = [(start, width)] tiling [0, k_pad) contiguously.
    """
    present = [(k, int(s)) for k, s in enumerate(sizes) if s is not None]
    small = [(k, s) for k, s in present if s <= LANE]
    large = [(k, s) for k, s in present if s > LANE]

    feats = []
    bin_fill = []
    for k, s in small:                      # first-fit into 128-lane bins
        placed = False
        for b, used in enumerate(bin_fill):
            if used + s <= LANE:
                feats.append((k, s, b * LANE + used, b))
                bin_fill[b] = used + s
                placed = True
                break
        if not placed:
            bin_fill.append(s)
            feats.append((k, s, (len(bin_fill) - 1) * LANE, len(bin_fill) - 1))
    windows = [(b * LANE, LANE) for b in range(len(bin_fill))]

    base = len(bin_fill) * LANE
    for k, s in large:
        w = _round_up(s, LANE)
        feats.append((k, s, base, len(windows)))
        windows.append((base, w))
        base += w
    return feats, windows, base


def _make_kernel(pack, n_cols, windows, win_feats):
    """windows: ((start, width), ...); win_feats[w]: feature columns in window w."""
    widths = tuple(sorted({w for (_, w) in windows}))

    def kernel(x_ref, consts_ref, hi_ref, lo_ref, out_ref):
        # x_ref:      (tile_m, pack*n_cols)                 f32
        # consts_ref: (3, pack*n_cols)                      f32  [scale; clipmax; local off]
        # hi_ref/lo:  (pack*k_pad, pack*d_model)            bf16 (block-diagonal hi/lo table)
        # out_ref:    (tile_m, pack*d_model)                f32  (lane-dense, 128-wide)
        tile_m = x_ref.shape[0]
        cvec = consts_ref[...]
        scale = cvec[0:1, :]
        clip_hi = cvec[1:2, :]
        loc_off = cvec[2:3, :].astype(jnp.int32)

        # Vectorized index math for all pack*n_cols columns at once.
        # clip-in-float then trunc-to-int matches .long()'s trunc-toward-zero
        # on the clamped non-negative value; offset added after the cast.
        xf = x_ref[...] + jnp.float32(0.5)                       # x = x + 0.5
        idx = jnp.clip(xf * scale, 0.0, clip_hi).astype(jnp.int32) + loc_off

        # One hoisted iota per distinct window width (128 / 384 here).
        iotas = {w: jax.lax.broadcasted_iota(jnp.int32, (tile_m, w), 1)
                 for w in widths}

        # Window-restricted compares; slabs concatenated in (pack, window)
        # order match the block-diagonal table's row layout exactly.
        slabs = []
        for j in range(pack):
            for widx, (_, width) in enumerate(windows):
                m = None
                for col in win_feats[widx]:
                    c = j * n_cols + col
                    hit = idx[:, c:c + 1] == iotas[width]
                    m = hit if m is None else jnp.logical_or(m, hit)
                slabs.append(m.astype(jnp.float32).astype(jnp.bfloat16))
        onehot = jnp.concatenate(slabs, axis=1)                  # (tile_m, pack*k_pad) bf16

        # Single fused K = pack*k_pad accumulation per table half (hi + lo
        # reproduces the f32 table; the 0/1 one-hot is exact in bf16).
        acc = jnp.dot(onehot, hi_ref[...], preferred_element_type=jnp.float32)
        acc = acc + jnp.dot(onehot, lo_ref[...], preferred_element_type=jnp.float32)
        out_ref[...] = acc

    return kernel


def temporal_embedding(x, tables, sizes, d_model, target_packed_rows=1024):
    """x: (B, T, F) float32 -> (B, T, d_model) float32."""
    B, T, F = x.shape
    N = B * T

    feats, windows, k_pad = _plan_layout(sizes)
    if not feats:
        # TODO(synk): the module returns the scalar 0 here; we return zeros.
        return jnp.zeros((B, T, d_model), dtype=jnp.float32)

    # Pack rows so the output tile is lane-dense when d_model divides 128.
    pack = 128 // d_model if (0 < d_model <= 128 and 128 % d_model == 0) else 1
    pack = max(1, min(pack, 8))

    # Fused zero-padded table in the window layout, split hi/lo bf16.
    tbl = jnp.zeros((k_pad, d_model), jnp.float32)
    for (col, size, goff, _) in feats:
        tbl = tbl.at[goff:goff + size, :].set(tables[col].astype(jnp.float32))
    hi = tbl.astype(jnp.bfloat16)
    lo = (tbl - hi.astype(jnp.float32)).astype(jnp.bfloat16)

    def block_diag(t):
        big = jnp.zeros((pack * k_pad, pack * d_model), t.dtype)
        for j in range(pack):
            big = big.at[j * k_pad:(j + 1) * k_pad,
                         j * d_model:(j + 1) * d_model].set(t)
        return big

    big_hi = block_diag(hi)
    big_lo = block_diag(lo)

    # Per-column constants (scale, clip max, window-local offset), repeated per
    # packed sub-row; passed as a tiny input so the index math is one wide op.
    scale = [0.0] * F
    clip_hi_v = [0.0] * F
    loc_off = [0.0] * F
    win_feats = [[] for _ in windows]
    for (col, size, goff, widx) in feats:
        scale[col] = float(size)
        clip_hi_v[col] = float(size - 1)
        loc_off[col] = float(goff - windows[widx][0])
        win_feats[widx].append(col)
    consts = jnp.tile(jnp.asarray([scale, clip_hi_v, loc_off], jnp.float32), (1, pack))

    # Tile selection: big tiles amortize the ~0.35us/step overhead; prefer >= 8
    # grid steps on large inputs so both v7x TensorCores get a balanced share.
    m_rows = _cdiv(N, pack)                                # packed output rows
    if m_rows <= target_packed_rows:
        tile_m = _round_up(m_rows, 8)
    else:
        n_steps = max(2, _cdiv(m_rows, target_packed_rows))
        if m_rows >= 8 * 256:
            n_steps = max(n_steps, 8)
        tile_m = _round_up(_cdiv(m_rows, n_steps), 8)
    tile_m = max(tile_m, 8)
    m_pad = _round_up(m_rows, tile_m)
    n_pad = m_pad * pack

    x_flat = x.reshape(N, F).astype(jnp.float32)
    if n_pad != N:
        x_flat = jnp.pad(x_flat, ((0, n_pad - N), (0, 0)))     # ragged-N padding
    x_packed = x_flat.reshape(m_pad, pack * F)                 # free row-major view

    kernel = _make_kernel(pack, F, tuple(windows),
                          tuple(tuple(c) for c in win_feats))
    grid = (m_pad // tile_m,)

    # Note: the table / consts BlockSpecs have constant index_maps, so Pallas
    # keeps those blocks resident across grid steps (no per-step re-DMA).
    out_packed = pl.pallas_call(
        kernel,
        out_shape=jax.ShapeDtypeStruct((m_pad, pack * d_model), jnp.float32),
        grid_spec=pltpu.PrefetchScalarGridSpec(
            num_scalar_prefetch=0,
            grid=grid,
            in_specs=[
                pl.BlockSpec((tile_m, pack * F), lambda i: (i, 0)),
                pl.BlockSpec((3, pack * F), lambda i: (0, 0)),
                pl.BlockSpec((pack * k_pad, pack * d_model), lambda i: (0, 0)),
                pl.BlockSpec((pack * k_pad, pack * d_model), lambda i: (0, 0)),
            ],
            out_specs=pl.BlockSpec((tile_m, pack * d_model), lambda i: (i, 0)),
        ),
        compiler_params=pltpu.CompilerParams(
            dimension_semantics=("parallel",),
            vmem_limit_bytes=48 * 1024 * 1024,
        ),
    )(x_packed, consts, big_hi, big_lo)

    # Unpack back to (B, T, d_model) -- reshapes are free row-major views.
    return out_packed.reshape(n_pad, d_model)[:N].reshape(B, T, d_model)


def temporal_embedding_reference(x, tables, sizes):
    """Pure-JAX reference matching the PyTorch forward (with clamped gather)."""
    xf = x + 0.5
    out = None
    for k, s in enumerate(sizes):
        if s is None:
            continue
        idx = jnp.clip((xf[..., k] * s).astype(jnp.int32), 0, s - 1)
        e = tables[k][idx]
        out = e if out is None else out + e
    return out


if __name__ == "__main__":
    # Module config (all four temporal features enabled, embed_type='fixed').
    d_model = 32
    sizes = (24, 7, 31, 366)  # time_of_day, day_of_week, day_of_month, day_of_year
    tables = tuple(fixed_embedding_table(s, d_model) for s in sizes)

    # Small example input: (B, T, F) with F = 4 temporal features,
    # values in [-0.5, 0.5) so (x + 0.5) * size stays inside each table.
    B, T, F = 2, 8, 4
    key = jax.random.PRNGKey(0)
    x = jax.random.uniform(key, (B, T, F), dtype=jnp.float32,
                           minval=-0.5, maxval=0.5)

    out = temporal_embedding(x, tables, sizes, d_model)
    out = jax.block_until_ready(out)

    ref = temporal_embedding_reference(x, tables, sizes)
    assert out.shape == (B, T, d_model)
    assert jnp.allclose(out, ref, atol=1e-3, rtol=1e-3), "mismatch vs reference"

    print("KERNEL_OK")
</pallas_src>

<mosaic_0001>
module attributes {stable_mosaic.version = 11 : i64} {
  func.func @kernel(%arg0: i32, %arg1: memref<8x16xf32, #tpu.memory_space<vmem>>, %arg2: memref<3x16xf32, #tpu.memory_space<vmem>>, %arg3: memref<2048x128xbf16, #tpu.memory_space<vmem>>, %arg4: memref<2048x128xbf16, #tpu.memory_space<vmem>>, %arg5: memref<8x128xf32, #tpu.memory_space<vmem>>) attributes {dimension_semantics = [#tpu.dimension_semantics<parallel>], iteration_bounds = array<i64: 1>, scalar_prefetch = 0 : i64, scratch_operands = 0 : i64, tpu.core_type = #tpu.core_type<tc>, window_params = [{transform_indices = @transform_0, window_bounds = array<i64: 8, 16>}, {pipeline_mode = #tpu.pipeline_mode<synchronous>, transform_indices = @transform_1, window_bounds = array<i64: 3, 16>}, {pipeline_mode = #tpu.pipeline_mode<synchronous>, transform_indices = @transform_2, window_bounds = array<i64: 2048, 128>}, {pipeline_mode = #tpu.pipeline_mode<synchronous>, transform_indices = @transform_3, window_bounds = array<i64: 2048, 128>}, {transform_indices = @transform_4, window_bounds = array<i64: 8, 128>}]} {
    %c0 = arith.constant 0 : index
    %c0_0 = arith.constant 0 : index
    %0 = vector.load %arg2[%c0, %c0_0] : memref<3x16xf32, #tpu.memory_space<vmem>>, vector<3x16xf32>
    %1 = vector.extract_strided_slice %0 {offsets = [0, 0], sizes = [1, 16], strides = [1, 1]} : vector<3x16xf32> to vector<1x16xf32>
    %2 = vector.extract_strided_slice %0 {offsets = [1, 0], sizes = [1, 16], strides = [1, 1]} : vector<3x16xf32> to vector<1x16xf32>
    %3 = vector.extract_strided_slice %0 {offsets = [2, 0], sizes = [1, 16], strides = [1, 1]} : vector<3x16xf32> to vector<1x16xf32>
    %4 = arith.fptosi %3 : vector<1x16xf32> to vector<1x16xi32>
    %c0_1 = arith.constant 0 : index
    %c0_2 = arith.constant 0 : index
    %5 = vector.load %arg1[%c0_1, %c0_2] : memref<8x16xf32, #tpu.memory_space<vmem>>, vector<8x16xf32>
    %cst = arith.constant 5.000000e-01 : f32
    %6 = vector.broadcast %cst : f32 to vector<8x16xf32>
    %7 = arith.addf %5, %6 : vector<8x16xf32>
    %8 = vector.broadcast %1 : vector<1x16xf32> to vector<8x16xf32>
    %9 = arith.mulf %7, %8 : vector<8x16xf32>
    %cst_3 = arith.constant 0.000000e+00 : f32
    %10 = vector.broadcast %cst_3 : f32 to vector<8x16xf32>
    %11 = arith.maximumf %10, %9 : vector<8x16xf32>
    %12 = vector.broadcast %2 : vector<1x16xf32> to vector<8x16xf32>
    %13 = arith.minimumf %12, %11 : vector<8x16xf32>
    %14 = arith.fptosi %13 : vector<8x16xf32> to vector<8x16xi32>
    %15 = vector.broadcast %4 : vector<1x16xi32> to vector<8x16xi32>
    %16 = arith.addi %14, %15 : vector<8x16xi32>
    %17 = tpu.iota {dimensions = array<i32: 1>} : vector<8x128xi32>
    %18 = tpu.iota {dimensions = array<i32: 1>} : vector<8x384xi32>
    %19 = vector.extract_strided_slice %16 {offsets = [0, 0], sizes = [8, 1], strides = [1, 1]} : vector<8x16xi32> to vector<8x1xi32>
    %20 = vector.broadcast %19 : vector<8x1xi32> to vector<8x128xi32>
    %21 = arith.cmpi eq, %20, %17 : vector<8x128xi32>
    %22 = vector.extract_strided_slice %16 {offsets = [0, 1], sizes = [8, 1], strides = [1, 1]} : vector<8x16xi32> to vector<8x1xi32>
    %23 = vector.broadcast %22 : vector<8x1xi32> to vector<8x128xi32>
    %24 = arith.cmpi eq, %23, %17 : vector<8x128xi32>
    %25 = arith.ori %21, %24 : vector<8x128xi1>
    %26 = vector.extract_strided_slice %16 {offsets = [0, 2], sizes = [8, 1], strides = [1, 1]} : vector<8x16xi32> to vector<8x1xi32>
    %27 = vector.broadcast %26 : vector<8x1xi32> to vector<8x128xi32>
    %28 = arith.cmpi eq, %27, %17 : vector<8x128xi32>
    %29 = arith.ori %25, %28 : vector<8x128xi1>
    %30 = arith.extui %29 : vector<8x128xi1> to vector<8x128xi32>
    %31 = arith.sitofp %30 : vector<8x128xi32> to vector<8x128xf32>
    %32 = arith.truncf %31 : vector<8x128xf32> to vector<8x128xbf16>
    %33 = vector.extract_strided_slice %16 {offsets = [0, 3], sizes = [8, 1], strides = [1, 1]} : vector<8x16xi32> to vector<8x1xi32>
    %34 = vector.broadcast %33 : vector<8x1xi32> to vector<8x384xi32>
    %35 = arith.cmpi eq, %34, %18 : vector<8x384xi32>
    %36 = arith.extui %35 : vector<8x384xi1> to vector<8x384xi32>
    %37 = arith.sitofp %36 : vector<8x384xi32> to vector<8x384xf32>
    %38 = arith.truncf %37 : vector<8x384xf32> to vector<8x384xbf16>
    %39 = vector.extract_strided_slice %16 {offsets = [0, 4], sizes = [8, 1], strides = [1, 1]} : vector<8x16xi32> to vector<8x1xi32>
    %40 = vector.broadcast %39 : vector<8x1xi32> to vector<8x128xi32>
    %41 = arith.cmpi eq, %40, %17 : vector<8x128xi32>
    %42 = vector.extract_strided_slice %16 {offsets = [0, 5], sizes = [8, 1], strides = [1, 1]} : vector<8x16xi32> to vector<8x1xi32>
    %43 = vector.broadcast %42 : vector<8x1xi32> to vector<8x128xi32>
    %44 = arith.cmpi eq, %43, %17 : vector<8x128xi32>
    %45 = arith.ori %41, %44 : vector<8x128xi1>
    %46 = vector.extract_strided_slice %16 {offsets = [0, 6], sizes = [8, 1], strides = [1, 1]} : vector<8x16xi32> to vector<8x1xi32>
    %47 = vector.broadcast %46 : vector<8x1xi32> to vector<8x128xi32>
    %48 = arith.cmpi eq, %47, %17 : vector<8x128xi32>
    %49 = arith.ori %45, %48 : vector<8x128xi1>
    %50 = arith.extui %49 : vector<8x128xi1> to vector<8x128xi32>
    %51 = arith.sitofp %50 : vector<8x128xi32> to vector<8x128xf32>
    %52 = arith.truncf %51 : vector<8x128xf32> to vector<8x128xbf16>
    %53 = vector.extract_strided_slice %16 {offsets = [0, 7], sizes = [8, 1], strides = [1, 1]} : vector<8x16xi32> to vector<8x1xi32>
    %54 = vector.broadcast %53 : vector<8x1xi32> to vector<8x384xi32>
    %55 = arith.cmpi eq, %54, %18 : vector<8x384xi32>
    %56 = arith.extui %55 : vector<8x384xi1> to vector<8x384xi32>
    %57 = arith.sitofp %56 : vector<8x384xi32> to vector<8x384xf32>
    %58 = arith.truncf %57 : vector<8x384xf32> to vector<8x384xbf16>
    %59 = vector.extract_strided_slice %16 {offsets = [0, 8], sizes = [8, 1], strides = [1, 1]} : vector<8x16xi32> to vector<8x1xi32>
    %60 = vector.broadcast %59 : vector<8x1xi32> to vector<8x128xi32>
    %61 = arith.cmpi eq, %60, %17 : vector<8x128xi32>
    %62 = vector.extract_strided_slice %16 {offsets = [0, 9], sizes = [8, 1], strides = [1, 1]} : vector<8x16xi32> to vector<8x1xi32>
    %63 = vector.broadcast %62 : vector<8x1xi32> to vector<8x128xi32>
    %64 = arith.cmpi eq, %63, %17 : vector<8x128xi32>
    %65 = arith.ori %61, %64 : vector<8x128xi1>
    %66 = vector.extract_strided_slice %16 {offsets = [0, 10], sizes = [8, 1], strides = [1, 1]} : vector<8x16xi32> to vector<8x1xi32>
    %67 = vector.broadcast %66 : vector<8x1xi32> to vector<8x128xi32>
    %68 = arith.cmpi eq, %67, %17 : vector<8x128xi32>
    %69 = arith.ori %65, %68 : vector<8x128xi1>
    %70 = arith.extui %69 : vector<8x128xi1> to vector<8x128xi32>
    %71 = arith.sitofp %70 : vector<8x128xi32> to vector<8x128xf32>
    %72 = arith.truncf %71 : vector<8x128xf32> to vector<8x128xbf16>
    %73 = vector.extract_strided_slice %16 {offsets = [0, 11], sizes = [8, 1], strides = [1, 1]} : vector<8x16xi32> to vector<8x1xi32>
    %74 = vector.broadcast %73 : vector<8x1xi32> to vector<8x384xi32>
    %75 = arith.cmpi eq, %74, %18 : vector<8x384xi32>
    %76 = arith.extui %75 : vector<8x384xi1> to vector<8x384xi32>
    %77 = arith.sitofp %76 : vector<8x384xi32> to vector<8x384xf32>
    %78 = arith.truncf %77 : vector<8x384xf32> to vector<8x384xbf16>
    %79 = vector.extract_strided_slice %16 {offsets = [0, 12], sizes = [8, 1], strides = [1, 1]} : vector<8x16xi32> to vector<8x1xi32>
    %80 = vector.broadcast %79 : vector<8x1xi32> to vector<8x128xi32>
    %81 = arith.cmpi eq, %80, %17 : vector<8x128xi32>
    %82 = vector.extract_strided_slice %16 {offsets = [0, 13], sizes = [8, 1], strides = [1, 1]} : vector<8x16xi32> to vector<8x1xi32>
    %83 = vector.broadcast %82 : vector<8x1xi32> to vector<8x128xi32>
    %84 = arith.cmpi eq, %83, %17 : vector<8x128xi32>
    %85 = arith.ori %81, %84 : vector<8x128xi1>
    %86 = vector.extract_strided_slice %16 {offsets = [0, 14], sizes = [8, 1], strides = [1, 1]} : vector<8x16xi32> to vector<8x1xi32>
    %87 = vector.broadcast %86 : vector<8x1xi32> to vector<8x128xi32>
    %88 = arith.cmpi eq, %87, %17 : vector<8x128xi32>
    %89 = arith.ori %85, %88 : vector<8x128xi1>
    %90 = arith.extui %89 : vector<8x128xi1> to vector<8x128xi32>
    %91 = arith.sitofp %90 : vector<8x128xi32> to vector<8x128xf32>
    %92 = arith.truncf %91 : vector<8x128xf32> to vector<8x128xbf16>
    %93 = vector.extract_strided_slice %16 {offsets = [0, 15], sizes = [8, 1], strides = [1, 1]} : vector<8x16xi32> to vector<8x1xi32>
    %94 = vector.broadcast %93 : vector<8x1xi32> to vector<8x384xi32>
    %95 = arith.cmpi eq, %94, %18 : vector<8x384xi32>
    %96 = arith.extui %95 : vector<8x384xi1> to vector<8x384xi32>
    %97 = arith.sitofp %96 : vector<8x384xi32> to vector<8x384xf32>
    %98 = arith.truncf %97 : vector<8x384xf32> to vector<8x384xbf16>
    %99 = tpu.concatenate %32, %38, %52, %58, %72, %78, %92, %98 in 1 : vector<8x128xbf16>, vector<8x384xbf16>, vector<8x128xbf16>, vector<8x384xbf16>, vector<8x128xbf16>, vector<8x384xbf16>, vector<8x128xbf16>, vector<8x384xbf16> -> vector<8x2048xbf16>
    %c0_4 = arith.constant 0 : index
    %c0_5 = arith.constant 0 : index
    %100 = vector.load %arg3[%c0_4, %c0_5] : memref<2048x128xbf16, #tpu.memory_space<vmem>>, vector<2048x128xbf16>
    %cst_6 = arith.constant dense<0.000000e+00> : vector<8x128xf32>
    %101 = tpu.matmul %99, %100, %cst_6 {dimension_numbers = #tpu.dot_dimension_numbers<[1], [0], [0], [1], [0, 0, 1, 1], [], []>} : vector<8x2048xbf16>, vector<2048x128xbf16>, vector<8x128xf32> -> vector<8x128xf32>
    %c0_7 = arith.constant 0 : index
    %c0_8 = arith.constant 0 : index
    %102 = vector.load %arg4[%c0_7, %c0_8] : memref<2048x128xbf16, #tpu.memory_space<vmem>>, vector<2048x128xbf16>
    %cst_9 = arith.constant dense<0.000000e+00> : vector<8x128xf32>
    %103 = tpu.matmul %99, %102, %cst_9 {dimension_numbers = #tpu.dot_dimension_numbers<[1], [0], [0], [1], [0, 0, 1, 1], [], []>} : vector<8x2048xbf16>, vector<2048x128xbf16>, vector<8x128xf32> -> vector<8x128xf32>
    %104 = arith.addf %101, %103 : vector<8x128xf32>
    %c0_10 = arith.constant 0 : index
    %c0_11 = arith.constant 0 : index
    %105 = vector.load %arg5[%c0_10, %c0_11] : memref<8x128xf32, #tpu.memory_space<vmem>>, vector<8x128xf32>
    tpu.vector_store %arg5[%c0_10, %c0_11], %104 {strides = array<i32>} : memref<8x128xf32, #tpu.memory_space<vmem>>, vector<8x128xf32>,
    return
  }
  func.func @transform_0(%arg0: i32) -> (i32, i32) {
    %c0_i32 = arith.constant 0 : i32
    %c0_i32_0 = arith.constant 0 : i32
    return %arg0, %c0_i32 : i32, i32
  }
  func.func @transform_1(%arg0: i32) -> (i32, i32) {
    %c0_i32 = arith.constant 0 : i32
    %c0_i32_0 = arith.constant 0 : i32
    %c0_i32_1 = arith.constant 0 : i32
    return %c0_i32, %c0_i32_0 : i32, i32
  }
  func.func @transform_2(%arg0: i32) -> (i32, i32) {
    %c0_i32 = arith.constant 0 : i32
    %c0_i32_0 = arith.constant 0 : i32
    %c0_i32_1 = arith.constant 0 : i32
    return %c0_i32, %c0_i32_0 : i32, i32
  }
  func.func @transform_3(%arg0: i32) -> (i32, i32) {
    %c0_i32 = arith.constant 0 : i32
    %c0_i32_0 = arith.constant 0 : i32
    %c0_i32_1 = arith.constant 0 : i32
    return %c0_i32, %c0_i32_0 : i32, i32
  }
  func.func @transform_4(%arg0: i32) -> (i32, i32) {
    %c0_i32 = arith.constant 0 : i32
    %c0_i32_0 = arith.constant 0 : i32
    return %arg0, %c0_i32 : i32, i32
  }
}

</mosaic_0001>

<llo_original>
// kernel: tpu_custom_call.1
$region0: #{tpu_custom_call.1}
  #allocation0 [shape = 'u32[]', space=smem, size = 0x4, offset = 0x4, fixed_abs, tag = 'smem constant byte address 0x4 - core index']
  #allocation1 [shape = 'u32[144,128]{1,0:T(1,128)}', space=vmem, size = 0x12000, scoped, tag = 'internal scratch']
  %s0 = inlined_call_operand.hbm [shape: f32[8,16], index: 0, kind: input, shape index: {}]
  %s1 = inlined_call_operand.hbm [shape: f32[3,16], index: 1, kind: input, shape index: {}]
  %s2 = inlined_call_operand.hbm [shape: bf16[2048,128], index: 2, kind: input, shape index: {}]
  %s3 = inlined_call_operand.hbm [shape: bf16[2048,128], index: 3, kind: input, shape index: {}]
  %s4 = inlined_call_operand.hbm [shape: f32[8,128], index: 4, kind: output, shape index: {}]
  %s5 = sld [smem:[#allocation0]]
  $region42: #{tpu_custom_call.1} parent=0
    _
  %s7 = ssub.s32 1, %s5
  %s8 = scalar_select 0, %s7, %s5
  $region1: #{tpu_custom_call.1} parent=0
    #allocation2 [shape = 'u8[4096]{0}', space=vmem, size = 0x1000, scoped, tag = 'input window, operand 0, single buffered']
    #allocation3 [shape = 's32[1]{0}', space=sflag, size = 0x4, scoped, tag = 'scoped memory for tpu_custom_call.1']
    #allocation4 [shape = 's32[1]{0}', space=sflag, size = 0x4, scoped, tag = 'scoped memory for tpu_custom_call.1']
    #allocation5 [shape = 'u8[2048]{0}', space=vmem, size = 0x800, scoped, tag = 'input window, operand 1, single buffered']
    #allocation6 [shape = 's32[1]{0}', space=sflag, size = 0x4, scoped, tag = 'scoped memory for tpu_custom_call.1']
    #allocation7 [shape = 'u8[524288]{0}', space=vmem, size = 0x80000, scoped, tag = 'input window, operand 2, single buffered']
    #allocation8 [shape = 'u8[524288]{0}', space=vmem, size = 0x80000, scoped, tag = 'input window, operand 3, single buffered']
    #allocation9 [shape = 's32[1]{0}', space=sflag, size = 0x4, scoped, tag = 'scoped memory for tpu_custom_call.1']
    #allocation10 [shape = 'u8[4096]{0}', space=vmem, size = 0x1000, scoped, tag = 'output window, operand 0, single buffered']
    %9 = vsyncpa [#allocation3], 0
    %10 = vsyncpa [#allocation6], 0
    %11 = vsyncpa [#allocation9], 0
    %12 = vsyncpa [#allocation4], 0
    // Predicated region
    $region2: #{tpu_custom_call.1} parent=1 // pred_check
      _
    $region3: #{tpu_custom_call.1} parent=1 // pred_check_branch
      %14 = sbr.rel (0) target = $region5
    $region4: #{tpu_custom_call.1} parent=1 // pred_region
      %s16 = ssub.s32 128, 128
      %17 = vsyncadd [#allocation3], %s16
      %s19 = sshll.u32 [#allocation2], 4
      %s20 = int_to_ptr.vmem [resolvable:$true] %s19
      %22 = dma.hbm_to_vmem [thread:$0]  %s0, 128, %s20, [#allocation3]
    $region5: #{tpu_custom_call.1} parent=1 // pred_fallthru
      _
    // Predicated region
    $region6: #{tpu_custom_call.1} parent=1 // pred_check
      _
    $region7: #{tpu_custom_call.1} parent=1 // pred_check_branch
      %24 = sbr.rel (0) target = $region9
    $region8: #{tpu_custom_call.1} parent=1 // pred_region
      %s26 = ssub.s32 64, 64
      %27 = vsyncadd [#allocation6], %s26
      %s29 = sshll.u32 [#allocation5], 4
      %s30 = int_to_ptr.vmem [resolvable:$true] %s29
      %32 = dma.hbm_to_vmem [thread:$0]  %s1, 64, %s30, [#allocation6]
    $region9: #{tpu_custom_call.1} parent=1 // pred_fallthru
      _
    // Predicated region
    $region10: #{tpu_custom_call.1} parent=1 // pred_check
      _
    $region11: #{tpu_custom_call.1} parent=1 // pred_check_branch
      %34 = sbr.rel (0) target = $region13
    $region12: #{tpu_custom_call.1} parent=1 // pred_region
      %s36 = ssub.s32 16384, 16384
      %37 = vsyncadd [#allocation6], %s36
      %s38 = sshll.u32 [#allocation7], 4
      %s39 = int_to_ptr.vmem [resolvable:$true] %s38
      %44 = dma.hbm_to_vmem [thread:$0]  %s2, 16384, %s39, [#allocation6], 64, 64, 4
    $region13: #{tpu_custom_call.1} parent=1 // pred_fallthru
      _
    // Predicated region
    $region14: #{tpu_custom_call.1} parent=1 // pred_check
      _
    $region15: #{tpu_custom_call.1} parent=1 // pred_check_branch
      %46 = sbr.rel (0) target = $region17
    $region16: #{tpu_custom_call.1} parent=1 // pred_region
      %s48 = ssub.s32 16384, 16384
      %49 = vsyncadd [#allocation9], %s48
      %s50 = sshll.u32 [#allocation8], 4
      %s51 = int_to_ptr.vmem [resolvable:$true] %s50
      %56 = dma.hbm_to_vmem [thread:$0]  %s3, 16384, %s51, [#allocation9], 64, 64, 4
    $region17: #{tpu_custom_call.1} parent=1 // pred_fallthru
      _
    // Predicated region
    $region18: #{tpu_custom_call.1} parent=1 // pred_check
      _
    $region19: #{tpu_custom_call.1} parent=1 // pred_check_branch
      %58 = sbr.rel (0) target = $region21
    $region20: #{tpu_custom_call.1} parent=1 // pred_region
      %59 = dma.done [#allocation3], 128
    $region21: #{tpu_custom_call.1} parent=1 // pred_fallthru
      _
    // Predicated region
    $region22: #{tpu_custom_call.1} parent=1 // pred_check
      _
    $region23: #{tpu_custom_call.1} parent=1 // pred_check_branch
      %61 = sbr.rel (0) target = $region25
    $region24: #{tpu_custom_call.1} parent=1 // pred_region
      %62 = dma.done [#allocation6], 64
    $region25: #{tpu_custom_call.1} parent=1 // pred_fallthru
      _
    // Predicated region
    $region26: #{tpu_custom_call.1} parent=1 // pred_check
      _
    $region27: #{tpu_custom_call.1} parent=1 // pred_check_branch
      %64 = sbr.rel (0) target = $region29
    $region28: #{tpu_custom_call.1} parent=1 // pred_region
      %65 = dma.done [#allocation6], 16384
    $region29: #{tpu_custom_call.1} parent=1 // pred_fallthru
      _
    // Predicated region
    $region30: #{tpu_custom_call.1} parent=1 // pred_check
      _
    $region31: #{tpu_custom_call.1} parent=1 // pred_check_branch
      %67 = sbr.rel (0) target = $region33
    $region32: #{tpu_custom_call.1} parent=1 // pred_region
      %68 = dma.done [#allocation9], 16384
    $region33: #{tpu_custom_call.1} parent=1 // pred_fallthru
      _
    %v70 = vld [vmem:[#allocation5] sm:$0x7]
    %v71 = vcvt.f32.s32.to.zero.pseudo %v70
    %v72 = vld [vmem:[#allocation2] sm:$0xff]
    %v73 = vadd.f32 %v72, 0.5
    %v74 = vlaneseq
    %v75 = vshrl.u32 %v74, 7
    %v76 = vsub.s32 0, %v75
    %v77 = vrot.slane %v70, %v76
    %v78 = vmul.f32 %v73, %v77
    %v79 = vmax.f32 %v78, 0.0
    %v80 = vlaneseq
    %v81 = vshrl.u32 %v80, 7
    %v82 = vsub.s32 1, %v81
    %v83 = vrot.slane %v70, %v82
    %v84 = vmin.f32 %v83, %v79
    %v85 = vcvt.f32.s32.to.zero.pseudo %v84
    %v86 = vlaneseq
    %v87 = vshrl.u32 %v86, 7
    %v88 = vsub.s32 2, %v87
    %v89 = vrot.slane %v71, %v88
    %v90 = vadd.s32 %v85, %v89
    %v91 = vlaneseq
    %v92 = vand.u32 %v91, 127
    %v93 = vadd.s32 %v92, 128
    %v94 = vadd.s32 %v92, 256
    %95 = vset.pattern.permute.xlu0 0
    %96 = vperm.xlu0 %95, %v90
    %v97 = vpop.permute.xlu0 %96
    %vm98 = vcmp.eq.s32.totalorder %v97, %v92
    %99 = vset.pattern.permute.xlu0 1
    %100 = vperm.xlu0 %99, %v90
    %v101 = vpop.permute.xlu0 %100
    %vm102 = vcmp.eq.s32.totalorder %v101, %v92
    %vm103 = vmor %vm98, %vm102
    %104 = vset.pattern.permute.xlu0 2
    %105 = vperm.xlu0 %104, %v90
    %v106 = vpop.permute.xlu0 %105
    %vm107 = vcmp.eq.s32.totalorder %v106, %v92
    %vm108 = vmor %vm103, %vm107
    %v109 = vsel %vm108, 1, 0
    %v110 = vcvt.s32.f32 %v109
    %v111 = vpack.c.bf16 %v110, %v110
    %112 = vset.pattern.permute.xlu0 3
    %113 = vperm.xlu0 %112, %v90
    %v114 = vpop.permute.xlu0 %113
    %vm115 = vcmp.eq.s32.totalorder %v114, %v92
    %vm116 = vcmp.eq.s32.totalorder %v114, %v93
    %vm117 = vcmp.eq.s32.totalorder %v114, %v94
    %v118 = vsel %vm115, 1, 0
    %v119 = vsel %vm116, 1, 0
    %v120 = vsel %vm117, 1, 0
    %v121 = vcvt.s32.f32 %v118
    %v122 = vcvt.s32.f32 %v119
    %v123 = vcvt.s32.f32 %v120
    %v124 = vpack.c.bf16 %v121, %v121
    %v125 = vpack.c.bf16 %v122, %v122
    %v126 = vpack.c.bf16 %v123, %v123
    %127 = vset.pattern.permute.xlu0 4
    %128 = vperm.xlu0 %127, %v90
    %v129 = vpop.permute.xlu0 %128
    %vm130 = vcmp.eq.s32.totalorder %v129, %v92
    %131 = vset.pattern.permute.xlu0 5
    %132 = vperm.xlu0 %131, %v90
    %v133 = vpop.permute.xlu0 %132
    %vm134 = vcmp.eq.s32.totalorder %v133, %v92
    %vm135 = vmor %vm130, %vm134
    %136 = vset.pattern.permute.xlu0 6
    %137 = vperm.xlu0 %136, %v90
    %v138 = vpop.permute.xlu0 %137
    %vm139 = vcmp.eq.s32.totalorder %v138, %v92
    %vm140 = vmor %vm135, %vm139
    %v141 = vsel %vm140, 1, 0
    %v142 = vcvt.s32.f32 %v141
    %v143 = vpack.c.bf16 %v142, %v142
    %144 = vset.pattern.permute.xlu0 7
    %145 = vperm.xlu0 %144, %v90
    %v146 = vpop.permute.xlu0 %145
    %vm147 = vcmp.eq.s32.totalorder %v146, %v92
    %vm148 = vcmp.eq.s32.totalorder %v146, %v93
    %vm149 = vcmp.eq.s32.totalorder %v146, %v94
    %v150 = vsel %vm147, 1, 0
    %v151 = vsel %vm148, 1, 0
    %v152 = vsel %vm149, 1, 0
    %v153 = vcvt.s32.f32 %v150
    %v154 = vcvt.s32.f32 %v151
    %v155 = vcvt.s32.f32 %v152
    %v156 = vpack.c.bf16 %v153, %v153
    %v157 = vpack.c.bf16 %v154, %v154
    %v158 = vpack.c.bf16 %v155, %v155
    %159 = vset.pattern.permute.xlu0 8
    %160 = vperm.xlu0 %159, %v90
    %v161 = vpop.permute.xlu0 %160
    %vm162 = vcmp.eq.s32.totalorder %v161, %v92
    %163 = vset.pattern.permute.xlu0 9
    %164 = vperm.xlu0 %163, %v90
    %v165 = vpop.permute.xlu0 %164
    %vm166 = vcmp.eq.s32.totalorder %v165, %v92
    %vm167 = vmor %vm162, %vm166
    %168 = vset.pattern.permute.xlu0 10
    %169 = vperm.xlu0 %168, %v90
    %v170 = vpop.permute.xlu0 %169
    %vm171 = vcmp.eq.s32.totalorder %v170, %v92
    %vm172 = vmor %vm167, %vm171
    %v173 = vsel %vm172, 1, 0
    %v174 = vcvt.s32.f32 %v173
    %v175 = vpack.c.bf16 %v174, %v174
    %176 = vset.pattern.permute.xlu0 11
    %177 = vperm.xlu0 %176, %v90
    %v178 = vpop.permute.xlu0 %177
    %vm179 = vcmp.eq.s32.totalorder %v178, %v92
    %vm180 = vcmp.eq.s32.totalorder %v178, %v93
    %vm181 = vcmp.eq.s32.totalorder %v178, %v94
    %v182 = vsel %vm179, 1, 0
    %v183 = vsel %vm180, 1, 0
    %v184 = vsel %vm181, 1, 0
    %v185 = vcvt.s32.f32 %v182
    %v186 = vcvt.s32.f32 %v183
    %v187 = vcvt.s32.f32 %v184
    %v188 = vpack.c.bf16 %v185, %v185
    %v189 = vpack.c.bf16 %v186, %v186
    %v190 = vpack.c.bf16 %v187, %v187
    %191 = vset.pattern.permute.xlu0 12
    %192 = vperm.xlu0 %191, %v90
    %v193 = vpop.permute.xlu0 %192
    %vm194 = vcmp.eq.s32.totalorder %v193, %v92
    %195 = vset.pattern.permute.xlu0 13
    %196 = vperm.xlu0 %195, %v90
    %v197 = vpop.permute.xlu0 %196
    %vm198 = vcmp.eq.s32.totalorder %v197, %v92
    %vm199 = vmor %vm194, %vm198
    %200 = vset.pattern.permute.xlu0 14
    %201 = vperm.xlu0 %200, %v90
    %v202 = vpop.permute.xlu0 %201
    %vm203 = vcmp.eq.s32.totalorder %v202, %v92
    %vm204 = vmor %vm199, %vm203
    %v205 = vsel %vm204, 1, 0
    %v206 = vcvt.s32.f32 %v205
    %v207 = vpack.c.bf16 %v206, %v206
    %208 = vset.pattern.permute.xlu0 15
    %209 = vperm.xlu0 %208, %v90
    %v210 = vpop.permute.xlu0 %209
    %vm211 = vcmp.eq.s32.totalorder %v210, %v92
    %vm212 = vcmp.eq.s32.totalorder %v210, %v93
    %vm213 = vcmp.eq.s32.totalorder %v210, %v94
    %v214 = vsel %vm211, 1, 0
    %v215 = vsel %vm212, 1, 0
    %v216 = vsel %vm213, 1, 0
    %v217 = vcvt.s32.f32 %v214
    %v218 = vcvt.s32.f32 %v215
    %v219 = vcvt.s32.f32 %v216
    %v220 = vpack.c.bf16 %v217, %v217
    %v221 = vpack.c.bf16 %v218, %v218
    %v222 = vpack.c.bf16 %v219, %v219
    %v223 = vld [vmem:[#allocation7] sm:$0xf]
    %v224 = vld [vmem:[#allocation7 + $0x4] sm:$0xf]
    %v225 = vld [vmem:[#allocation7 + $0x8] sm:$0xf]
    %v226 = vld [vmem:[#allocation7 + $0xc] sm:$0xf]
    %v227 = vld [vmem:[#allocation7 + $0x10] sm:$0xf]
    %v228 = vld [vmem:[#allocation7 + $0x14] sm:$0xf]
    %v229 = vld [vmem:[#allocation7 + $0x18] sm:$0xf]
    %v230 = vld [vmem:[#allocation7 + $0x1c] sm:$0xf]
    %v231 = vld [vmem:[#allocation7 + $0x20] sm:$0xf]
    %v232 = vld [vmem:[#allocation7 + $0x24] sm:$0xf]
    %v233 = vld [vmem:[#allocation7 + $0x28] sm:$0xf]
    %v234 = vld [vmem:[#allocation7 + $0x2c] sm:$0xf]
    %v235 = vld [vmem:[#allocation7 + $0x30] sm:$0xf]
    %v236 = vld [vmem:[#allocation7 + $0x34] sm:$0xf]
    %v237 = vld [vmem:[#allocation7 + $0x38] sm:$0xf]
    %v238 = vld [vmem:[#allocation7 + $0x3c] sm:$0xf]
    %v239 = vld [vmem:[#allocation7 + $0x40] sm:$0xf]
    %v240 = vld [vmem:[#allocation7 + $0x44] sm:$0xf]
    %v241 = vld [vmem:[#allocation7 + $0x48] sm:$0xf]
    %v242 = vld [vmem:[#allocation7 + $0x4c] sm:$0xf]
    %v243 = vld [vmem:[#allocation7 + $0x50] sm:$0xf]
    %v244 = vld [vmem:[#allocation7 + $0x54] sm:$0xf]
    %v245 = vld [vmem:[#allocation7 + $0x58] sm:$0xf]
    %v246 = vld [vmem:[#allocation7 + $0x5c] sm:$0xf]
    %v247 = vld [vmem:[#allocation7 + $0x60] sm:$0xf]
    %v248 = vld [vmem:[#allocation7 + $0x64] sm:$0xf]
    %v249 = vld [vmem:[#allocation7 + $0x68] sm:$0xf]
    %v250 = vld [vmem:[#allocation7 + $0x6c] sm:$0xf]
    %v251 = vld [vmem:[#allocation7 + $0x70] sm:$0xf]
    %v252 = vld [vmem:[#allocation7 + $0x74] sm:$0xf]
    %v253 = vld [vmem:[#allocation7 + $0x78] sm:$0xf]
    %v254 = vld [vmem:[#allocation7 + $0x7c] sm:$0xf]
    %v255 = vld [vmem:[#allocation7 + $0x80] sm:$0xf]
    %v256 = vld [vmem:[#allocation7 + $0x84] sm:$0xf]
    %v257 = vld [vmem:[#allocation7 + $0x88] sm:$0xf]
    %v258 = vld [vmem:[#allocation7 + $0x8c] sm:$0xf]
    %v259 = vld [vmem:[#allocation7 + $0x90] sm:$0xf]
    %v260 = vld [vmem:[#allocation7 + $0x94] sm:$0xf]
    %v261 = vld [vmem:[#allocation7 + $0x98] sm:$0xf]
    %v262 = vld [vmem:[#allocation7 + $0x9c] sm:$0xf]
    %v263 = vld [vmem:[#allocation7 + $0xa0] sm:$0xf]
    %v264 = vld [vmem:[#allocation7 + $0xa4] sm:$0xf]
    %v265 = vld [vmem:[#allocation7 + $0xa8] sm:$0xf]
    %v266 = vld [vmem:[#allocation7 + $0xac] sm:$0xf]
    %v267 = vld [vmem:[#allocation7 + $0xb0] sm:$0xf]
    %v268 = vld [vmem:[#allocation7 + $0xb4] sm:$0xf]
    %v269 = vld [vmem:[#allocation7 + $0xb8] sm:$0xf]
    %v270 = vld [vmem:[#allocation7 + $0xbc] sm:$0xf]
    %v271 = vld [vmem:[#allocation7 + $0xc0] sm:$0xf]
    %v272 = vld [vmem:[#allocation7 + $0xc4] sm:$0xf]
    %v273 = vld [vmem:[#allocation7 + $0xc8] sm:$0xf]
    %v274 = vld [vmem:[#allocation7 + $0xcc] sm:$0xf]
    %v275 = vld [vmem:[#allocation7 + $0xd0] sm:$0xf]
    %v276 = vld [vmem:[#allocation7 + $0xd4] sm:$0xf]
    %v277 = vld [vmem:[#allocation7 + $0xd8] sm:$0xf]
    %v278 = vld [vmem:[#allocation7 + $0xdc] sm:$0xf]
    %v279 = vld [vmem:[#allocation7 + $0xe0] sm:$0xf]
    %v280 = vld [vmem:[#allocation7 + $0xe4] sm:$0xf]
    %v281 = vld [vmem:[#allocation7 + $0xe8] sm:$0xf]
    %v282 = vld [vmem:[#allocation7 + $0xec] sm:$0xf]
    %v283 = vld [vmem:[#allocation7 + $0xf0] sm:$0xf]
    %v284 = vld [vmem:[#allocation7 + $0xf4] sm:$0xf]
    %v285 = vld [vmem:[#allocation7 + $0xf8] sm:$0xf]
    %v286 = vld [vmem:[#allocation7 + $0xfc] sm:$0xf]
    %v287 = vld [vmem:[#allocation7 + $0x100] sm:$0xf]
    %v288 = vld [vmem:[#allocation7 + $0x104] sm:$0xf]
    %v289 = vld [vmem:[#allocation7 + $0x108] sm:$0xf]
    %v290 = vld [vmem:[#allocation7 + $0x10c] sm:$0xf]
    %v291 = vld [vmem:[#allocation7 + $0x110] sm:$0xf]
    %v292 = vld [vmem:[#allocation7 + $0x114] sm:$0xf]
    %v293 = vld [vmem:[#allocation7 + $0x118] sm:$0xf]
    %v294 = vld [vmem:[#allocation7 + $0x11c] sm:$0xf]
    %v295 = vld [vmem:[#allocation7 + $0x120] sm:$0xf]
    %v296 = vld [vmem:[#allocation7 + $0x124] sm:$0xf]
    %v297 = vld [vmem:[#allocation7 + $0x128] sm:$0xf]
    %v298 = vld [vmem:[#allocation7 + $0x12c] sm:$0xf]
    %v299 = vld [vmem:[#allocation7 + $0x130] sm:$0xf]
    %v300 = vld [vmem:[#allocation7 + $0x134] sm:$0xf]
    %v301 = vld [vmem:[#allocation7 + $0x138] sm:$0xf]
    %v302 = vld [vmem:[#allocation7 + $0x13c] sm:$0xf]
    %v303 = vld [vmem:[#allocation7 + $0x140] sm:$0xf]
    %v304 = vld [vmem:[#allocation7 + $0x144] sm:$0xf]
    %v305 = vld [vmem:[#allocation7 + $0x148] sm:$0xf]
    %v306 = vld [vmem:[#allocation7 + $0x14c] sm:$0xf]
    %v307 = vld [vmem:[#allocation7 + $0x150] sm:$0xf]
    %v308 = vld [vmem:[#allocation7 + $0x154] sm:$0xf]
    %v309 = vld [vmem:[#allocation7 + $0x158] sm:$0xf]
    %v310 = vld [vmem:[#allocation7 + $0x15c] sm:$0xf]
    %v311 = vld [vmem:[#allocation7 + $0x160] sm:$0xf]
    %v312 = vld [vmem:[#allocation7 + $0x164] sm:$0xf]
    %v313 = vld [vmem:[#allocation7 + $0x168] sm:$0xf]
    %v314 = vld [vmem:[#allocation7 + $0x16c] sm:$0xf]
    %v315 = vld [vmem:[#allocation7 + $0x170] sm:$0xf]
    %v316 = vld [vmem:[#allocation7 + $0x174] sm:$0xf]
    %v317 = vld [vmem:[#allocation7 + $0x178] sm:$0xf]
    %v318 = vld [vmem:[#allocation7 + $0x17c] sm:$0xf]
    %v319 = vld [vmem:[#allocation7 + $0x180] sm:$0xf]
    %v320 = vld [vmem:[#allocation7 + $0x184] sm:$0xf]
    %v321 = vld [vmem:[#allocation7 + $0x188] sm:$0xf]
    %v322 = vld [vmem:[#allocation7 + $0x18c] sm:$0xf]
    %v323 = vld [vmem:[#allocation7 + $0x190] sm:$0xf]
    %v324 = vld [vmem:[#allocation7 + $0x194] sm:$0xf]
    %v325 = vld [vmem:[#allocation7 + $0x198] sm:$0xf]
    %v326 = vld [vmem:[#allocation7 + $0x19c] sm:$0xf]
    %v327 = vld [vmem:[#allocation7 + $0x1a0] sm:$0xf]
    %v328 = vld [vmem:[#allocation7 + $0x1a4] sm:$0xf]
    %v329 = vld [vmem:[#allocation7 + $0x1a8] sm:$0xf]
    %v330 = vld [vmem:[#allocation7 + $0x1ac] sm:$0xf]
    %v331 = vld [vmem:[#allocation7 + $0x1b0] sm:$0xf]
    %v332 = vld [vmem:[#allocation7 + $0x1b4] sm:$0xf]
    %v333 = vld [vmem:[#allocation7 + $0x1b8] sm:$0xf]
    %v334 = vld [vmem:[#allocation7 + $0x1bc] sm:$0xf]
    %v335 = vld [vmem:[#allocation7 + $0x1c0] sm:$0xf]
    %v336 = vld [vmem:[#allocation7 + $0x1c4] sm:$0xf]
    %v337 = vld [vmem:[#allocation7 + $0x1c8] sm:$0xf]
    %v338 = vld [vmem:[#allocation7 + $0x1cc] sm:$0xf]
    %v339 = vld [vmem:[#allocation7 + $0x1d0] sm:$0xf]
    %v340 = vld [vmem:[#allocation7 + $0x1d4] sm:$0xf]
    %v341 = vld [vmem:[#allocation7 + $0x1d8] sm:$0xf]
    %v342 = vld [vmem:[#allocation7 + $0x1dc] sm:$0xf]
    %v343 = vld [vmem:[#allocation7 + $0x1e0] sm:$0xf]
    %v344 = vld [vmem:[#allocation7 + $0x1e4] sm:$0xf]
    %v345 = vld [vmem:[#allocation7 + $0x1e8] sm:$0xf]
    %v346 = vld [vmem:[#allocation7 + $0x1ec] sm:$0xf]
    %v347 = vld [vmem:[#allocation7 + $0x1f0] sm:$0xf]
    %v348 = vld [vmem:[#allocation7 + $0x1f4] sm:$0xf]
    %v349 = vld [vmem:[#allocation7 + $0x1f8] sm:$0xf]
    %v350 = vld [vmem:[#allocation7 + $0x1fc] sm:$0xf]
    %v351 = vld [vmem:[#allocation7 + $0x200] sm:$0xf]
    %v352 = vld [vmem:[#allocation7 + $0x204] sm:$0xf]
    %v353 = vld [vmem:[#allocation7 + $0x208] sm:$0xf]
    %v354 = vld [vmem:[#allocation7 + $0x20c] sm:$0xf]
    %v355 = vld [vmem:[#allocation7 + $0x210] sm:$0xf]
    %v356 = vld [vmem:[#allocation7 + $0x214] sm:$0xf]
    %v357 = vld [vmem:[#allocation7 + $0x218] sm:$0xf]
    %v358 = vld [vmem:[#allocation7 + $0x21c] sm:$0xf]
    %v359 = vld [vmem:[#allocation7 + $0x220] sm:$0xf]
    %v360 = vld [vmem:[#allocation7 + $0x224] sm:$0xf]
    %v361 = vld [vmem:[#allocation7 + $0x228] sm:$0xf]
    %v362 = vld [vmem:[#allocation7 + $0x22c] sm:$0xf]
    %v363 = vld [vmem:[#allocation7 + $0x230] sm:$0xf]
    %v364 = vld [vmem:[#allocation7 + $0x234] sm:$0xf]
    %v365 = vld [vmem:[#allocation7 + $0x238] sm:$0xf]
    %v366 = vld [vmem:[#allocation7 + $0x23c] sm:$0xf]
    %v367 = vld [vmem:[#allocation7 + $0x240] sm:$0xf]
    %v368 = vld [vmem:[#allocation7 + $0x244] sm:$0xf]
    %v369 = vld [vmem:[#allocation7 + $0x248] sm:$0xf]
    %v370 = vld [vmem:[#allocation7 + $0x24c] sm:$0xf]
    %v371 = vld [vmem:[#allocation7 + $0x250] sm:$0xf]
    %v372 = vld [vmem:[#allocation7 + $0x254] sm:$0xf]
    %v373 = vld [vmem:[#allocation7 + $0x258] sm:$0xf]
    %v374 = vld [vmem:[#allocation7 + $0x25c] sm:$0xf]
    %v375 = vld [vmem:[#allocation7 + $0x260] sm:$0xf]
    %v376 = vld [vmem:[#allocation7 + $0x264] sm:$0xf]
    %v377 = vld [vmem:[#allocation7 + $0x268] sm:$0xf]
    %v378 = vld [vmem:[#allocation7 + $0x26c] sm:$0xf]
    %v379 = vld [vmem:[#allocation7 + $0x270] sm:$0xf]
    %v380 = vld [vmem:[#allocation7 + $0x274] sm:$0xf]
    %v381 = vld [vmem:[#allocation7 + $0x278] sm:$0xf]
    %v382 = vld [vmem:[#allocation7 + $0x27c] sm:$0xf]
    %v383 = vld [vmem:[#allocation7 + $0x280] sm:$0xf]
    %v384 = vld [vmem:[#allocation7 + $0x284] sm:$0xf]
    %v385 = vld [vmem:[#allocation7 + $0x288] sm:$0xf]
    %v386 = vld [vmem:[#allocation7 + $0x28c] sm:$0xf]
    %v387 = vld [vmem:[#allocation7 + $0x290] sm:$0xf]
    %v388 = vld [vmem:[#allocation7 + $0x294] sm:$0xf]
    %v389 = vld [vmem:[#allocation7 + $0x298] sm:$0xf]
    %v390 = vld [vmem:[#allocation7 + $0x29c] sm:$0xf]
    %v391 = vld [vmem:[#allocation7 + $0x2a0] sm:$0xf]
    %v392 = vld [vmem:[#allocation7 + $0x2a4] sm:$0xf]
    %v393 = vld [vmem:[#allocation7 + $0x2a8] sm:$0xf]
    %v394 = vld [vmem:[#allocation7 + $0x2ac] sm:$0xf]
    %v395 = vld [vmem:[#allocation7 + $0x2b0] sm:$0xf]
    %v396 = vld [vmem:[#allocation7 + $0x2b4] sm:$0xf]
    %v397 = vld [vmem:[#allocation7 + $0x2b8] sm:$0xf]
    %v398 = vld [vmem:[#allocation7 + $0x2bc] sm:$0xf]
    %v399 = vld [vmem:[#allocation7 + $0x2c0] sm:$0xf]
    %v400 = vld [vmem:[#allocation7 + $0x2c4] sm:$0xf]
    %v401 = vld [vmem:[#allocation7 + $0x2c8] sm:$0xf]
    %v402 = vld [vmem:[#allocation7 + $0x2cc] sm:$0xf]
    %v403 = vld [vmem:[#allocation7 + $0x2d0] sm:$0xf]
    %v404 = vld [vmem:[#allocation7 + $0x2d4] sm:$0xf]
    %v405 = vld [vmem:[#allocation7 + $0x2d8] sm:$0xf]
    %v406 = vld [vmem:[#allocation7 + $0x2dc] sm:$0xf]
    %v407 = vld [vmem:[#allocation7 + $0x2e0] sm:$0xf]
    %v408 = vld [vmem:[#allocation7 + $0x2e4] sm:$0xf]
    %v409 = vld [vmem:[#allocation7 + $0x2e8] sm:$0xf]
    %v410 = vld [vmem:[#allocation7 + $0x2ec] sm:$0xf]
    %v411 = vld [vmem:[#allocation7 + $0x2f0] sm:$0xf]
    %v412 = vld [vmem:[#allocation7 + $0x2f4] sm:$0xf]
    %v413 = vld [vmem:[#allocation7 + $0x2f8] sm:$0xf]
    %v414 = vld [vmem:[#allocation7 + $0x2fc] sm:$0xf]
    %v415 = vld [vmem:[#allocation7 + $0x300] sm:$0xf]
    %v416 = vld [vmem:[#allocation7 + $0x304] sm:$0xf]
    %v417 = vld [vmem:[#allocation7 + $0x308] sm:$0xf]
    %v418 = vld [vmem:[#allocation7 + $0x30c] sm:$0xf]
    %v419 = vld [vmem:[#allocation7 + $0x310] sm:$0xf]
    %v420 = vld [vmem:[#allocation7 + $0x314] sm:$0xf]
    %v421 = vld [vmem:[#allocation7 + $0x318] sm:$0xf]
    %v422 = vld [vmem:[#allocation7 + $0x31c] sm:$0xf]
    %v423 = vld [vmem:[#allocation7 + $0x320] sm:$0xf]
    %v424 = vld [vmem:[#allocation7 + $0x324] sm:$0xf]
    %v425 = vld [vmem:[#allocation7 + $0x328] sm:$0xf]
    %v426 = vld [vmem:[#allocation7 + $0x32c] sm:$0xf]
    %v427 = vld [vmem:[#allocation7 + $0x330] sm:$0xf]
    %v428 = vld [vmem:[#allocation7 + $0x334] sm:$0xf]
    %v429 = vld [vmem:[#allocation7 + $0x338] sm:$0xf]
    %v430 = vld [vmem:[#allocation7 + $0x33c] sm:$0xf]
    %v431 = vld [vmem:[#allocation7 + $0x340] sm:$0xf]
    %v432 = vld [vmem:[#allocation7 + $0x344] sm:$0xf]
    %v433 = vld [vmem:[#allocation7 + $0x348] sm:$0xf]
    %v434 = vld [vmem:[#allocation7 + $0x34c] sm:$0xf]
    %v435 = vld [vmem:[#allocation7 + $0x350] sm:$0xf]
    %v436 = vld [vmem:[#allocation7 + $0x354] sm:$0xf]
    %v437 = vld [vmem:[#allocation7 + $0x358] sm:$0xf]
    %v438 = vld [vmem:[#allocation7 + $0x35c] sm:$0xf]
    %v439 = vld [vmem:[#allocation7 + $0x360] sm:$0xf]
    %v440 = vld [vmem:[#allocation7 + $0x364] sm:$0xf]
    %v441 = vld [vmem:[#allocation7 + $0x368] sm:$0xf]
    %v442 = vld [vmem:[#allocation7 + $0x36c] sm:$0xf]
    %v443 = vld [vmem:[#allocation7 + $0x370] sm:$0xf]
    %v444 = vld [vmem:[#allocation7 + $0x374] sm:$0xf]
    %v445 = vld [vmem:[#allocation7 + $0x378] sm:$0xf]
    %v446 = vld [vmem:[#allocation7 + $0x37c] sm:$0xf]
    %v447 = vld [vmem:[#allocation7 + $0x380] sm:$0xf]
    %v448 = vld [vmem:[#allocation7 + $0x384] sm:$0xf]
    %v449 = vld [vmem:[#allocation7 + $0x388] sm:$0xf]
    %v450 = vld [vmem:[#allocation7 + $0x38c] sm:$0xf]
    %v451 = vld [vmem:[#allocation7 + $0x390] sm:$0xf]
    %v452 = vld [vmem:[#allocation7 + $0x394] sm:$0xf]
    %v453 = vld [vmem:[#allocation7 + $0x398] sm:$0xf]
    %v454 = vld [vmem:[#allocation7 + $0x39c] sm:$0xf]
    %v455 = vld [vmem:[#allocation7 + $0x3a0] sm:$0xf]
    %v456 = vld [vmem:[#allocation7 + $0x3a4] sm:$0xf]
    %v457 = vld [vmem:[#allocation7 + $0x3a8] sm:$0xf]
    %v458 = vld [vmem:[#allocation7 + $0x3ac] sm:$0xf]
    %v459 = vld [vmem:[#allocation7 + $0x3b0] sm:$0xf]
    %v460 = vld [vmem:[#allocation7 + $0x3b4] sm:$0xf]
    %v461 = vld [vmem:[#allocation7 + $0x3b8] sm:$0xf]
    %v462 = vld [vmem:[#allocation7 + $0x3bc] sm:$0xf]
    %v463 = vld [vmem:[#allocation7 + $0x3c0] sm:$0xf]
    %v464 = vld [vmem:[#allocation7 + $0x3c4] sm:$0xf]
    %v465 = vld [vmem:[#allocation7 + $0x3c8] sm:$0xf]
    %v466 = vld [vmem:[#allocation7 + $0x3cc] sm:$0xf]
    %v467 = vld [vmem:[#allocation7 + $0x3d0] sm:$0xf]
    %v468 = vld [vmem:[#allocation7 + $0x3d4] sm:$0xf]
    %v469 = vld [vmem:[#allocation7 + $0x3d8] sm:$0xf]
    %v470 = vld [vmem:[#allocation7 + $0x3dc] sm:$0xf]
    %v471 = vld [vmem:[#allocation7 + $0x3e0] sm:$0xf]
    %v472 = vld [vmem:[#allocation7 + $0x3e4] sm:$0xf]
    %v473 = vld [vmem:[#allocation7 + $0x3e8] sm:$0xf]
    %v474 = vld [vmem:[#allocation7 + $0x3ec] sm:$0xf]
    %v475 = vld [vmem:[#allocation7 + $0x3f0] sm:$0xf]
    %v476 = vld [vmem:[#allocation7 + $0x3f4] sm:$0xf]
    %v477 = vld [vmem:[#allocation7 + $0x3f8] sm:$0xf]
    %v478 = vld [vmem:[#allocation7 + $0x3fc] sm:$0xf]
    %v479 = vld [vmem:[#allocation8] sm:$0xf]
    %v480 = vld [vmem:[#allocation8 + $0x4] sm:$0xf]
    %v481 = vld [vmem:[#allocation8 + $0x8] sm:$0xf]
    %v482 = vld [vmem:[#allocation8 + $0xc] sm:$0xf]
    %v483 = vld [vmem:[#allocation8 + $0x10] sm:$0xf]
    %v484 = vld [vmem:[#allocation8 + $0x14] sm:$0xf]
    %v485 = vld [vmem:[#allocation8 + $0x18] sm:$0xf]
    %v486 = vld [vmem:[#allocation8 + $0x1c] sm:$0xf]
    %v487 = vld [vmem:[#allocation8 + $0x20] sm:$0xf]
    %v488 = vld [vmem:[#allocation8 + $0x24] sm:$0xf]
    %v489 = vld [vmem:[#allocation8 + $0x28] sm:$0xf]
    %v490 = vld [vmem:[#allocation8 + $0x2c] sm:$0xf]
    %v491 = vld [vmem:[#allocation8 + $0x30] sm:$0xf]
    %v492 = vld [vmem:[#allocation8 + $0x34] sm:$0xf]
    %v493 = vld [vmem:[#allocation8 + $0x38] sm:$0xf]
    %v494 = vld [vmem:[#allocation8 + $0x3c] sm:$0xf]
    %v495 = vld [vmem:[#allocation8 + $0x40] sm:$0xf]
    %v496 = vld [vmem:[#allocation8 + $0x44] sm:$0xf]
    %v497 = vld [vmem:[#allocation8 + $0x48] sm:$0xf]
    %v498 = vld [vmem:[#allocation8 + $0x4c] sm:$0xf]
    %v499 = vld [vmem:[#allocation8 + $0x50] sm:$0xf]
    %v500 = vld [vmem:[#allocation8 + $0x54] sm:$0xf]
    %v501 = vld [vmem:[#allocation8 + $0x58] sm:$0xf]
    %v502 = vld [vmem:[#allocation8 + $0x5c] sm:$0xf]
    %v503 = vld [vmem:[#allocation8 + $0x60] sm:$0xf]
    %v504 = vld [vmem:[#allocation8 + $0x64] sm:$0xf]
    %v505 = vld [vmem:[#allocation8 + $0x68] sm:$0xf]
    %v506 = vld [vmem:[#allocation8 + $0x6c] sm:$0xf]
    %v507 = vld [vmem:[#allocation8 + $0x70] sm:$0xf]
    %v508 = vld [vmem:[#allocation8 + $0x74] sm:$0xf]
    %v509 = vld [vmem:[#allocation8 + $0x78] sm:$0xf]
    %v510 = vld [vmem:[#allocation8 + $0x7c] sm:$0xf]
    %v511 = vld [vmem:[#allocation8 + $0x80] sm:$0xf]
    %v512 = vld [vmem:[#allocation8 + $0x84] sm:$0xf]
    %v513 = vld [vmem:[#allocation8 + $0x88] sm:$0xf]
    %v514 = vld [vmem:[#allocation8 + $0x8c] sm:$0xf]
    %v515 = vld [vmem:[#allocation8 + $0x90] sm:$0xf]
    %v516 = vld [vmem:[#allocation8 + $0x94] sm:$0xf]
    %v517 = vld [vmem:[#allocation8 + $0x98] sm:$0xf]
    %v518 = vld [vmem:[#allocation8 + $0x9c] sm:$0xf]
    %v519 = vld [vmem:[#allocation8 + $0xa0] sm:$0xf]
    %v520 = vld [vmem:[#allocation8 + $0xa4] sm:$0xf]
    %v521 = vld [vmem:[#allocation8 + $0xa8] sm:$0xf]
    %v522 = vld [vmem:[#allocation8 + $0xac] sm:$0xf]
    %v523 = vld [vmem:[#allocation8 + $0xb0] sm:$0xf]
    %v524 = vld [vmem:[#allocation8 + $0xb4] sm:$0xf]
    %v525 = vld [vmem:[#allocation8 + $0xb8] sm:$0xf]
    %v526 = vld [vmem:[#allocation8 + $0xbc] sm:$0xf]
    %v527 = vld [vmem:[#allocation8 + $0xc0] sm:$0xf]
    %v528 = vld [vmem:[#allocation8 + $0xc4] sm:$0xf]
    %v529 = vld [vmem:[#allocation8 + $0xc8] sm:$0xf]
    %v530 = vld [vmem:[#allocation8 + $0xcc] sm:$0xf]
    %v531 = vld [vmem:[#allocation8 + $0xd0] sm:$0xf]
    %v532 = vld [vmem:[#allocation8 + $0xd4] sm:$0xf]
    %v533 = vld [vmem:[#allocation8 + $0xd8] sm:$0xf]
    %v534 = vld [vmem:[#allocation8 + $0xdc] sm:$0xf]
    %v535 = vld [vmem:[#allocation8 + $0xe0] sm:$0xf]
    %v536 = vld [vmem:[#allocation8 + $0xe4] sm:$0xf]
    %v537 = vld [vmem:[#allocation8 + $0xe8] sm:$0xf]
    %v538 = vld [vmem:[#allocation8 + $0xec] sm:$0xf]
    %v539 = vld [vmem:[#allocation8 + $0xf0] sm:$0xf]
    %v540 = vld [vmem:[#allocation8 + $0xf4] sm:$0xf]
    %v541 = vld [vmem:[#allocation8 + $0xf8] sm:$0xf]
    %v542 = vld [vmem:[#allocation8 + $0xfc] sm:$0xf]
    %v543 = vld [vmem:[#allocation8 + $0x100] sm:$0xf]
    %v544 = vld [vmem:[#allocation8 + $0x104] sm:$0xf]
    %v545 = vld [vmem:[#allocation8 + $0x108] sm:$0xf]
    %v546 = vld [vmem:[#allocation8 + $0x10c] sm:$0xf]
    %v547 = vld [vmem:[#allocation8 + $0x110] sm:$0xf]
    %v548 = vld [vmem:[#allocation8 + $0x114] sm:$0xf]
    %v549 = vld [vmem:[#allocation8 + $0x118] sm:$0xf]
    %v550 = vld [vmem:[#allocation8 + $0x11c] sm:$0xf]
    %v551 = vld [vmem:[#allocation8 + $0x120] sm:$0xf]
    %v552 = vld [vmem:[#allocation8 + $0x124] sm:$0xf]
    %v553 = vld [vmem:[#allocation8 + $0x128] sm:$0xf]
    %v554 = vld [vmem:[#allocation8 + $0x12c] sm:$0xf]
    %v555 = vld [vmem:[#allocation8 + $0x130] sm:$0xf]
    %v556 = vld [vmem:[#allocation8 + $0x134] sm:$0xf]
    %v557 = vld [vmem:[#allocation8 + $0x138] sm:$0xf]
    %v558 = vld [vmem:[#allocation8 + $0x13c] sm:$0xf]
    %v559 = vld [vmem:[#allocation8 + $0x140] sm:$0xf]
    %v560 = vld [vmem:[#allocation8 + $0x144] sm:$0xf]
    %v561 = vld [vmem:[#allocation8 + $0x148] sm:$0xf]
    %v562 = vld [vmem:[#allocation8 + $0x14c] sm:$0xf]
    %v563 = vld [vmem:[#allocation8 + $0x150] sm:$0xf]
    %v564 = vld [vmem:[#allocation8 + $0x154] sm:$0xf]
    %v565 = vld [vmem:[#allocation8 + $0x158] sm:$0xf]
    %v566 = vld [vmem:[#allocation8 + $0x15c] sm:$0xf]
    %v567 = vld [vmem:[#allocation8 + $0x160] sm:$0xf]
    %v568 = vld [vmem:[#allocation8 + $0x164] sm:$0xf]
    %v569 = vld [vmem:[#allocation8 + $0x168] sm:$0xf]
    %v570 = vld [vmem:[#allocation8 + $0x16c] sm:$0xf]
    %v571 = vld [vmem:[#allocation8 + $0x170] sm:$0xf]
    %v572 = vld [vmem:[#allocation8 + $0x174] sm:$0xf]
    %v573 = vld [vmem:[#allocation8 + $0x178] sm:$0xf]
    %v574 = vld [vmem:[#allocation8 + $0x17c] sm:$0xf]
    %v575 = vld [vmem:[#allocation8 + $0x180] sm:$0xf]
    %v576 = vld [vmem:[#allocation8 + $0x184] sm:$0xf]
    %v577 = vld [vmem:[#allocation8 + $0x188] sm:$0xf]
    %v578 = vld [vmem:[#allocation8 + $0x18c] sm:$0xf]
    %v579 = vld [vmem:[#allocation8 + $0x190] sm:$0xf]
    %v580 = vld [vmem:[#allocation8 + $0x194] sm:$0xf]
    %v581 = vld [vmem:[#allocation8 + $0x198] sm:$0xf]
    %v582 = vld [vmem:[#allocation8 + $0x19c] sm:$0xf]
    %v583 = vld [vmem:[#allocation8 + $0x1a0] sm:$0xf]
    %v584 = vld [vmem:[#allocation8 + $0x1a4] sm:$0xf]
    %v585 = vld [vmem:[#allocation8 + $0x1a8] sm:$0xf]
    %v586 = vld [vmem:[#allocation8 + $0x1ac] sm:$0xf]
    %v587 = vld [vmem:[#allocation8 + $0x1b0] sm:$0xf]
    %v588 = vld [vmem:[#allocation8 + $0x1b4] sm:$0xf]
    %v589 = vld [vmem:[#allocation8 + $0x1b8] sm:$0xf]
    %v590 = vld [vmem:[#allocation8 + $0x1bc] sm:$0xf]
    %v591 = vld [vmem:[#allocation8 + $0x1c0] sm:$0xf]
    %v592 = vld [vmem:[#allocation8 + $0x1c4] sm:$0xf]
    %v593 = vld [vmem:[#allocation8 + $0x1c8] sm:$0xf]
    %v594 = vld [vmem:[#allocation8 + $0x1cc] sm:$0xf]
    %v595 = vld [vmem:[#allocation8 + $0x1d0] sm:$0xf]
    %v596 = vld [vmem:[#allocation8 + $0x1d4] sm:$0xf]
    %v597 = vld [vmem:[#allocation8 + $0x1d8] sm:$0xf]
    %v598 = vld [vmem:[#allocation8 + $0x1dc] sm:$0xf]
    %v599 = vld [vmem:[#allocation8 + $0x1e0] sm:$0xf]
    %v600 = vld [vmem:[#allocation8 + $0x1e4] sm:$0xf]
    %v601 = vld [vmem:[#allocation8 + $0x1e8] sm:$0xf]
    %v602 = vld [vmem:[#allocation8 + $0x1ec] sm:$0xf]
    %v603 = vld [vmem:[#allocation8 + $0x1f0] sm:$0xf]
    %v604 = vld [vmem:[#allocation8 + $0x1f4] sm:$0xf]
    %v605 = vld [vmem:[#allocation8 + $0x1f8] sm:$0xf]
    %v606 = vld [vmem:[#allocation8 + $0x1fc] sm:$0xf]
    %v607 = vld [vmem:[#allocation8 + $0x200] sm:$0xf]
    %v608 = vld [vmem:[#allocation8 + $0x204] sm:$0xf]
    %v609 = vld [vmem:[#allocation8 + $0x208] sm:$0xf]
    %v610 = vld [vmem:[#allocation8 + $0x20c] sm:$0xf]
    %v611 = vld [vmem:[#allocation8 + $0x210] sm:$0xf]
    %v612 = vld [vmem:[#allocation8 + $0x214] sm:$0xf]
    %v613 = vld [vmem:[#allocation8 + $0x218] sm:$0xf]
    %v614 = vld [vmem:[#allocation8 + $0x21c] sm:$0xf]
    %v615 = vld [vmem:[#allocation8 + $0x220] sm:$0xf]
    %v616 = vld [vmem:[#allocation8 + $0x224] sm:$0xf]
    %v617 = vld [vmem:[#allocation8 + $0x228] sm:$0xf]
    %v618 = vld [vmem:[#allocation8 + $0x22c] sm:$0xf]
    %v619 = vld [vmem:[#allocation8 + $0x230] sm:$0xf]
    %v620 = vld [vmem:[#allocation8 + $0x234] sm:$0xf]
    %v621 = vld [vmem:[#allocation8 + $0x238] sm:$0xf]
    %v622 = vld [vmem:[#allocation8 + $0x23c] sm:$0xf]
    %v623 = vld [vmem:[#allocation8 + $0x240] sm:$0xf]
    %v624 = vld [vmem:[#allocation8 + $0x244] sm:$0xf]
    %v625 = vld [vmem:[#allocation8 + $0x248] sm:$0xf]
    %v626 = vld [vmem:[#allocation8 + $0x24c] sm:$0xf]
    %v627 = vld [vmem:[#allocation8 + $0x250] sm:$0xf]
    %v628 = vld [vmem:[#allocation8 + $0x254] sm:$0xf]
    %v629 = vld [vmem:[#allocation8 + $0x258] sm:$0xf]
    %v630 = vld [vmem:[#allocation8 + $0x25c] sm:$0xf]
    %v631 = vld [vmem:[#allocation8 + $0x260] sm:$0xf]
    %v632 = vld [vmem:[#allocation8 + $0x264] sm:$0xf]
    %v633 = vld [vmem:[#allocation8 + $0x268] sm:$0xf]
    %v634 = vld [vmem:[#allocation8 + $0x26c] sm:$0xf]
    %v635 = vld [vmem:[#allocation8 + $0x270] sm:$0xf]
    %v636 = vld [vmem:[#allocation8 + $0x274] sm:$0xf]
    %v637 = vld [vmem:[#allocation8 + $0x278] sm:$0xf]
    %v638 = vld [vmem:[#allocation8 + $0x27c] sm:$0xf]
    %v639 = vld [vmem:[#allocation8 + $0x280] sm:$0xf]
    %v640 = vld [vmem:[#allocation8 + $0x284] sm:$0xf]
    %v641 = vld [vmem:[#allocation8 + $0x288] sm:$0xf]
    %v642 = vld [vmem:[#allocation8 + $0x28c] sm:$0xf]
    %v643 = vld [vmem:[#allocation8 + $0x290] sm:$0xf]
    %v644 = vld [vmem:[#allocation8 + $0x294] sm:$0xf]
    %v645 = vld [vmem:[#allocation8 + $0x298] sm:$0xf]
    %v646 = vld [vmem:[#allocation8 + $0x29c] sm:$0xf]
    %v647 = vld [vmem:[#allocation8 + $0x2a0] sm:$0xf]
    %v648 = vld [vmem:[#allocation8 + $0x2a4] sm:$0xf]
    %v649 = vld [vmem:[#allocation8 + $0x2a8] sm:$0xf]
    %v650 = vld [vmem:[#allocation8 + $0x2ac] sm:$0xf]
    %v651 = vld [vmem:[#allocation8 + $0x2b0] sm:$0xf]
    %v652 = vld [vmem:[#allocation8 + $0x2b4] sm:$0xf]
    %v653 = vld [vmem:[#allocation8 + $0x2b8] sm:$0xf]
    %v654 = vld [vmem:[#allocation8 + $0x2bc] sm:$0xf]
    %v655 = vld [vmem:[#allocation8 + $0x2c0] sm:$0xf]
    %v656 = vld [vmem:[#allocation8 + $0x2c4] sm:$0xf]
    %v657 = vld [vmem:[#allocation8 + $0x2c8] sm:$0xf]
    %v658 = vld [vmem:[#allocation8 + $0x2cc] sm:$0xf]
    %v659 = vld [vmem:[#allocation8 + $0x2d0] sm:$0xf]
    %v660 = vld [vmem:[#allocation8 + $0x2d4] sm:$0xf]
    %v661 = vld [vmem:[#allocation8 + $0x2d8] sm:$0xf]
    %v662 = vld [vmem:[#allocation8 + $0x2dc] sm:$0xf]
    %v663 = vld [vmem:[#allocation8 + $0x2e0] sm:$0xf]
    %v664 = vld [vmem:[#allocation8 + $0x2e4] sm:$0xf]
    %v665 = vld [vmem:[#allocation8 + $0x2e8] sm:$0xf]
    %v666 = vld [vmem:[#allocation8 + $0x2ec] sm:$0xf]
    %v667 = vld [vmem:[#allocation8 + $0x2f0] sm:$0xf]
    %v668 = vld [vmem:[#allocation8 + $0x2f4] sm:$0xf]
    %v669 = vld [vmem:[#allocation8 + $0x2f8] sm:$0xf]
    %v670 = vld [vmem:[#allocation8 + $0x2fc] sm:$0xf]
    %v671 = vld [vmem:[#allocation8 + $0x300] sm:$0xf]
    %v672 = vld [vmem:[#allocation8 + $0x304] sm:$0xf]
    %v673 = vld [vmem:[#allocation8 + $0x308] sm:$0xf]
    %v674 = vld [vmem:[#allocation8 + $0x30c] sm:$0xf]
    %v675 = vld [vmem:[#allocation8 + $0x310] sm:$0xf]
    %v676 = vld [vmem:[#allocation8 + $0x314] sm:$0xf]
    %v677 = vld [vmem:[#allocation8 + $0x318] sm:$0xf]
    %v678 = vld [vmem:[#allocation8 + $0x31c] sm:$0xf]
    %v679 = vld [vmem:[#allocation8 + $0x320] sm:$0xf]
    %v680 = vld [vmem:[#allocation8 + $0x324] sm:$0xf]
    %v681 = vld [vmem:[#allocation8 + $0x328] sm:$0xf]
    %v682 = vld [vmem:[#allocation8 + $0x32c] sm:$0xf]
    %v683 = vld [vmem:[#allocation8 + $0x330] sm:$0xf]
    %v684 = vld [vmem:[#allocation8 + $0x334] sm:$0xf]
    %v685 = vld [vmem:[#allocation8 + $0x338] sm:$0xf]
    %v686 = vld [vmem:[#allocation8 + $0x33c] sm:$0xf]
    %v687 = vld [vmem:[#allocation8 + $0x340] sm:$0xf]
    %v688 = vld [vmem:[#allocation8 + $0x344] sm:$0xf]
    %v689 = vld [vmem:[#allocation8 + $0x348] sm:$0xf]
    %v690 = vld [vmem:[#allocation8 + $0x34c] sm:$0xf]
    %v691 = vld [vmem:[#allocation8 + $0x350] sm:$0xf]
    %v692 = vld [vmem:[#allocation8 + $0x354] sm:$0xf]
    %v693 = vld [vmem:[#allocation8 + $0x358] sm:$0xf]
    %v694 = vld [vmem:[#allocation8 + $0x35c] sm:$0xf]
    %v695 = vld [vmem:[#allocation8 + $0x360] sm:$0xf]
    %v696 = vld [vmem:[#allocation8 + $0x364] sm:$0xf]
    %v697 = vld [vmem:[#allocation8 + $0x368] sm:$0xf]
    %v698 = vld [vmem:[#allocation8 + $0x36c] sm:$0xf]
    %v699 = vld [vmem:[#allocation8 + $0x370] sm:$0xf]
    %v700 = vld [vmem:[#allocation8 + $0x374] sm:$0xf]
    %v701 = vld [vmem:[#allocation8 + $0x378] sm:$0xf]
    %v702 = vld [vmem:[#allocation8 + $0x37c] sm:$0xf]
    %v703 = vld [vmem:[#allocation8 + $0x380] sm:$0xf]
    %v704 = vld [vmem:[#allocation8 + $0x384] sm:$0xf]
    %v705 = vld [vmem:[#allocation8 + $0x388] sm:$0xf]
    %v706 = vld [vmem:[#allocation8 + $0x38c] sm:$0xf]
    %v707 = vld [vmem:[#allocation8 + $0x390] sm:$0xf]
    %v708 = vld [vmem:[#allocation8 + $0x394] sm:$0xf]
    %v709 = vld [vmem:[#allocation8 + $0x398] sm:$0xf]
    %v710 = vld [vmem:[#allocation8 + $0x39c] sm:$0xf]
    %v711 = vld [vmem:[#allocation8 + $0x3a0] sm:$0xf]
    %v712 = vld [vmem:[#allocation8 + $0x3a4] sm:$0xf]
    %v713 = vld [vmem:[#allocation8 + $0x3a8] sm:$0xf]
    %v714 = vld [vmem:[#allocation8 + $0x3ac] sm:$0xf]
    %v715 = vld [vmem:[#allocation8 + $0x3b0] sm:$0xf]
    %v716 = vld [vmem:[#allocation8 + $0x3b4] sm:$0xf]
    %v717 = vld [vmem:[#allocation8 + $0x3b8] sm:$0xf]
    %v718 = vld [vmem:[#allocation8 + $0x3bc] sm:$0xf]
    %v719 = vld [vmem:[#allocation8 + $0x3c0] sm:$0xf]
    %v720 = vld [vmem:[#allocation8 + $0x3c4] sm:$0xf]
    %v721 = vld [vmem:[#allocation8 + $0x3c8] sm:$0xf]
    %v722 = vld [vmem:[#allocation8 + $0x3cc] sm:$0xf]
    %v723 = vld [vmem:[#allocation8 + $0x3d0] sm:$0xf]
    %v724 = vld [vmem:[#allocation8 + $0x3d4] sm:$0xf]
    %v725 = vld [vmem:[#allocation8 + $0x3d8] sm:$0xf]
    %v726 = vld [vmem:[#allocation8 + $0x3dc] sm:$0xf]
    %v727 = vld [vmem:[#allocation8 + $0x3e0] sm:$0xf]
    %v728 = vld [vmem:[#allocation8 + $0x3e4] sm:$0xf]
    %v729 = vld [vmem:[#allocation8 + $0x3e8] sm:$0xf]
    %v730 = vld [vmem:[#allocation8 + $0x3ec] sm:$0xf]
    %v731 = vld [vmem:[#allocation8 + $0x3f0] sm:$0xf]
    %v732 = vld [vmem:[#allocation8 + $0x3f4] sm:$0xf]
    %v733 = vld [vmem:[#allocation8 + $0x3f8] sm:$0xf]
    %v734 = vld [vmem:[#allocation8 + $0x3fc] sm:$0xf]
    %v991 = vunpack.c.l.b16 %v479
    %v992 = vunpack.c.l.b16 %v480
    %v993 = vunpack.c.l.b16 %v481
    %v994 = vunpack.c.l.b16 %v482
    %v995 = vunpack.c.l.b16 %v483
    %v996 = vunpack.c.l.b16 %v484
    %v997 = vunpack.c.l.b16 %v485
    %v998 = vunpack.c.l.b16 %v486
    %v999 = vunpack.c.l.b16 %v487
    %v1000 = vunpack.c.l.b16 %v488
    %v1001 = vunpack.c.l.b16 %v489
    %v1002 = vunpack.c.l.b16 %v490
    %v1003 = vunpack.c.l.b16 %v491
    %v1004 = vunpack.c.l.b16 %v492
    %v1005 = vunpack.c.l.b16 %v493
    %v1006 = vunpack.c.l.b16 %v494
    %v1007 = vunpack.c.l.b16 %v495
    %v1008 = vunpack.c.l.b16 %v496
    %v1009 = vunpack.c.l.b16 %v497
    %v1010 = vunpack.c.l.b16 %v498
    %v1011 = vunpack.c.l.b16 %v499
    %v1012 = vunpack.c.l.b16 %v500
    %v1013 = vunpack.c.l.b16 %v501
    %v1014 = vunpack.c.l.b16 %v502
    %v1015 = vunpack.c.l.b16 %v503
    %v1016 = vunpack.c.l.b16 %v504
    %v1017 = vunpack.c.l.b16 %v505
    %v1018 = vunpack.c.l.b16 %v506
    %v1019 = vunpack.c.l.b16 %v507
    %v1020 = vunpack.c.l.b16 %v508
    %v1021 = vunpack.c.l.b16 %v509
    %v1022 = vunpack.c.l.b16 %v510
    %v1023 = vunpack.c.l.b16 %v511
    %v1024 = vunpack.c.l.b16 %v512
    %v1025 = vunpack.c.l.b16 %v513
    %v1026 = vunpack.c.l.b16 %v514
    %v1027 = vunpack.c.l.b16 %v515
    %v1028 = vunpack.c.l.b16 %v516
    %v1029 = vunpack.c.l.b16 %v517
    %v1030 = vunpack.c.l.b16 %v518
    %v1031 = vunpack.c.l.b16 %v519
    %v1032 = vunpack.c.l.b16 %v520
    %v1033 = vunpack.c.l.b16 %v521
    %v1034 = vunpack.c.l.b16 %v522
    %v1035 = vunpack.c.l.b16 %v523
    %v1036 = vunpack.c.l.b16 %v524
    %v1037 = vunpack.c.l.b16 %v525
    %v1038 = vunpack.c.l.b16 %v526
    %v1039 = vunpack.c.l.b16 %v527
    %v1040 = vunpack.c.l.b16 %v528
    %v1041 = vunpack.c.l.b16 %v529
    %v1042 = vunpack.c.l.b16 %v530
    %v1043 = vunpack.c.l.b16 %v531
    %v1044 = vunpack.c.l.b16 %v532
    %v1045 = vunpack.c.l.b16 %v533
    %v1046 = vunpack.c.l.b16 %v534
    %v1047 = vunpack.c.l.b16 %v535
    %v1048 = vunpack.c.l.b16 %v536
    %v1049 = vunpack.c.l.b16 %v537
    %v1050 = vunpack.c.l.b16 %v538
    %v1051 = vunpack.c.l.b16 %v539
    %v1052 = vunpack.c.l.b16 %v540
    %v1053 = vunpack.c.l.b16 %v541
    %v1054 = vunpack.c.l.b16 %v542
    %v1055 = vunpack.c.l.b16 %v543
    %v1056 = vunpack.c.l.b16 %v544
    %v1057 = vunpack.c.l.b16 %v545
    %v1058 = vunpack.c.l.b16 %v546
    %v1059 = vunpack.c.l.b16 %v547
    %v1060 = vunpack.c.l.b16 %v548
    %v1061 = vunpack.c.l.b16 %v549
    %v1062 = vunpack.c.l.b16 %v550
    %v1063 = vunpack.c.l.b16 %v551
    %v1064 = vunpack.c.l.b16 %v552
    %v1065 = vunpack.c.l.b16 %v553
    %v1066 = vunpack.c.l.b16 %v554
    %v1067 = vunpack.c.l.b16 %v555
    %v1068 = vunpack.c.l.b16 %v556
    %v1069 = vunpack.c.l.b16 %v557
    %v1070 = vunpack.c.l.b16 %v558
    %v1071 = vunpack.c.l.b16 %v559
    %v1072 = vunpack.c.l.b16 %v560
    %v1073 = vunpack.c.l.b16 %v561
    %v1074 = vunpack.c.l.b16 %v562
    %v1075 = vunpack.c.l.b16 %v563
    %v1076 = vunpack.c.l.b16 %v564
    %v1077 = vunpack.c.l.b16 %v565
    %v1078 = vunpack.c.l.b16 %v566
    %v1079 = vunpack.c.l.b16 %v567
    %v1080 = vunpack.c.l.b16 %v568
    %v1081 = vunpack.c.l.b16 %v569
    %v1082 = vunpack.c.l.b16 %v570
    %v1083 = vunpack.c.l.b16 %v571
    %v1084 = vunpack.c.l.b16 %v572
    %v1085 = vunpack.c.l.b16 %v573
    %v1086 = vunpack.c.l.b16 %v574
    %v1087 = vunpack.c.l.b16 %v575
    %v1088 = vunpack.c.l.b16 %v576
    %v1089 = vunpack.c.l.b16 %v577
    %v1090 = vunpack.c.l.b16 %v578
    %v1091 = vunpack.c.l.b16 %v579
    %v1092 = vunpack.c.l.b16 %v580
    %v1093 = vunpack.c.l.b16 %v581
    %v1094 = vunpack.c.l.b16 %v582
    %v1095 = vunpack.c.l.b16 %v583
    %v1096 = vunpack.c.l.b16 %v584
    %v1097 = vunpack.c.l.b16 %v585
    %v1098 = vunpack.c.l.b16 %v586
    %v1099 = vunpack.c.l.b16 %v587
    %v1100 = vunpack.c.l.b16 %v588
    %v1101 = vunpack.c.l.b16 %v589
    %v1102 = vunpack.c.l.b16 %v590
    %v1103 = vunpack.c.l.b16 %v591
    %v1104 = vunpack.c.l.b16 %v592
    %v1105 = vunpack.c.l.b16 %v593
    %v1106 = vunpack.c.l.b16 %v594
    %v1107 = vunpack.c.l.b16 %v595
    %v1108 = vunpack.c.l.b16 %v596
    %v1109 = vunpack.c.l.b16 %v597
    %v1110 = vunpack.c.l.b16 %v598
    %v1111 = vunpack.c.l.b16 %v599
    %v1112 = vunpack.c.l.b16 %v600
    %v1113 = vunpack.c.l.b16 %v601
    %v1114 = vunpack.c.l.b16 %v602
    %v1115 = vunpack.c.l.b16 %v603
    %v1116 = vunpack.c.l.b16 %v604
    %v1117 = vunpack.c.l.b16 %v605
    %v1118 = vunpack.c.l.b16 %v606
    %v1119 = vunpack.c.l.b16 %v607
    %v1120 = vunpack.c.l.b16 %v608
    %v1121 = vunpack.c.l.b16 %v609
    %v1122 = vunpack.c.l.b16 %v610
    %v1123 = vunpack.c.l.b16 %v611
    %v1124 = vunpack.c.l.b16 %v612
    %v1125 = vunpack.c.l.b16 %v613
    %v1126 = vunpack.c.l.b16 %v614
    %v1127 = vunpack.c.l.b16 %v615
    %v1128 = vunpack.c.l.b16 %v616
    %v1129 = vunpack.c.l.b16 %v617
    %v1130 = vunpack.c.l.b16 %v618
    %v1131 = vunpack.c.l.b16 %v619
    %v1132 = vunpack.c.l.b16 %v620
    %v1133 = vunpack.c.l.b16 %v621
    %v1134 = vunpack.c.l.b16 %v622
    %v1135 = vunpack.c.l.b16 %v623
    %v1136 = vunpack.c.l.b16 %v624
    %v1137 = vunpack.c.l.b16 %v625
    %v1138 = vunpack.c.l.b16 %v626
    %v1139 = vunpack.c.l.b16 %v627
    %v1140 = vunpack.c.l.b16 %v628
    %v1141 = vunpack.c.l.b16 %v629
    %v1142 = vunpack.c.l.b16 %v630
    %v1143 = vunpack.c.l.b16 %v631
    %v1144 = vunpack.c.l.b16 %v632
    %v1145 = vunpack.c.l.b16 %v633
    %v1146 = vunpack.c.l.b16 %v634
    %v1147 = vunpack.c.l.b16 %v635
    %v1148 = vunpack.c.l.b16 %v636
    %v1149 = vunpack.c.l.b16 %v637
    %v1150 = vunpack.c.l.b16 %v638
    %v1151 = vunpack.c.l.b16 %v639
    %v1152 = vunpack.c.l.b16 %v640
    %v1153 = vunpack.c.l.b16 %v641
    %v1154 = vunpack.c.l.b16 %v642
    %v1155 = vunpack.c.l.b16 %v643
    %v1156 = vunpack.c.l.b16 %v644
    %v1157 = vunpack.c.l.b16 %v645
    %v1158 = vunpack.c.l.b16 %v646
    %v1159 = vunpack.c.l.b16 %v647
    %v1160 = vunpack.c.l.b16 %v648
    %v1161 = vunpack.c.l.b16 %v649
    %v1162 = vunpack.c.l.b16 %v650
    %v1163 = vunpack.c.l.b16 %v651
    %v1164 = vunpack.c.l.b16 %v652
    %v1165 = vunpack.c.l.b16 %v653
    %v1166 = vunpack.c.l.b16 %v654
    %v1167 = vunpack.c.l.b16 %v655
    %v1168 = vunpack.c.l.b16 %v656
    %v1169 = vunpack.c.l.b16 %v657
    %v1170 = vunpack.c.l.b16 %v658
    %v1171 = vunpack.c.l.b16 %v659
    %v1172 = vunpack.c.l.b16 %v660
    %v1173 = vunpack.c.l.b16 %v661
    %v1174 = vunpack.c.l.b16 %v662
    %v1175 = vunpack.c.l.b16 %v663
    %v1176 = vunpack.c.l.b16 %v664
    %v1177 = vunpack.c.l.b16 %v665
    %v1178 = vunpack.c.l.b16 %v666
    %v1179 = vunpack.c.l.b16 %v667
    %v1180 = vunpack.c.l.b16 %v668
    %v1181 = vunpack.c.l.b16 %v669
    %v1182 = vunpack.c.l.b16 %v670
    %v1183 = vunpack.c.l.b16 %v671
    %v1184 = vunpack.c.l.b16 %v672
    %v1185 = vunpack.c.l.b16 %v673
    %v1186 = vunpack.c.l.b16 %v674
    %v1187 = vunpack.c.l.b16 %v675
    %v1188 = vunpack.c.l.b16 %v676
    %v1189 = vunpack.c.l.b16 %v677
    %v1190 = vunpack.c.l.b16 %v678
    %v1191 = vunpack.c.l.b16 %v679
    %v1192 = vunpack.c.l.b16 %v680
    %v1193 = vunpack.c.l.b16 %v681
    %v1194 = vunpack.c.l.b16 %v682
    %v1195 = vunpack.c.l.b16 %v683
    %v1196 = vunpack.c.l.b16 %v684
    %v1197 = vunpack.c.l.b16 %v685
    %v1198 = vunpack.c.l.b16 %v686
    %v1199 = vunpack.c.l.b16 %v687
    %v1200 = vunpack.c.l.b16 %v688
    %v1201 = vunpack.c.l.b16 %v689
    %v1202 = vunpack.c.l.b16 %v690
    %v1203 = vunpack.c.l.b16 %v691
    %v1204 = vunpack.c.l.b16 %v692
    %v1205 = vunpack.c.l.b16 %v693
    %v1206 = vunpack.c.l.b16 %v694
    %v1207 = vunpack.c.l.b16 %v695
    %v1208 = vunpack.c.l.b16 %v696
    %v1209 = vunpack.c.l.b16 %v697
    %v1210 = vunpack.c.l.b16 %v698
    %v1211 = vunpack.c.l.b16 %v699
    %v1212 = vunpack.c.l.b16 %v700
    %v1213 = vunpack.c.l.b16 %v701
    %v1214 = vunpack.c.l.b16 %v702
    %v1215 = vunpack.c.l.b16 %v703
    %v1216 = vunpack.c.l.b16 %v704
    %v1217 = vunpack.c.l.b16 %v705
    %v1218 = vunpack.c.l.b16 %v706
    %v1219 = vunpack.c.l.b16 %v707
    %v1220 = vunpack.c.l.b16 %v708
    %v1221 = vunpack.c.l.b16 %v709
    %v1222 = vunpack.c.l.b16 %v710
    %v1223 = vunpack.c.l.b16 %v711
    %v1224 = vunpack.c.l.b16 %v712
    %v1225 = vunpack.c.l.b16 %v713
    %v1226 = vunpack.c.l.b16 %v714
    %v1227 = vunpack.c.l.b16 %v715
    %v1228 = vunpack.c.l.b16 %v716
    %v1229 = vunpack.c.l.b16 %v717
    %v1230 = vunpack.c.l.b16 %v718
    %v1231 = vunpack.c.l.b16 %v719
    %v1232 = vunpack.c.l.b16 %v720
    %v1233 = vunpack.c.l.b16 %v721
    %v1234 = vunpack.c.l.b16 %v722
    %v1235 = vunpack.c.l.b16 %v723
    %v1236 = vunpack.c.l.b16 %v724
    %v1237 = vunpack.c.l.b16 %v725
    %v1238 = vunpack.c.l.b16 %v726
    %v1239 = vunpack.c.l.b16 %v727
    %v1240 = vunpack.c.l.b16 %v728
    %v1241 = vunpack.c.l.b16 %v729
    %v1242 = vunpack.c.l.b16 %v730
    %v1243 = vunpack.c.l.b16 %v731
    %v1244 = vunpack.c.l.b16 %v732
    %v1245 = vunpack.c.l.b16 %v733
    %v1246 = vunpack.c.l.b16 %v734
    %v1247 = vpack.c.b16 %v992, %v991
    %v1248 = vpack.c.b16 %v994, %v993
    %v1249 = vpack.c.b16 %v996, %v995
    %v1250 = vpack.c.b16 %v998, %v997
    %v1251 = vpack.c.b16 %v1000, %v999
    %v1252 = vpack.c.b16 %v1002, %v1001
    %v1253 = vpack.c.b16 %v1004, %v1003
    %v1254 = vpack.c.b16 %v1006, %v1005
    %v1255 = vpack.c.b16 %v1008, %v1007
    %v1256 = vpack.c.b16 %v1010, %v1009
    %v1257 = vpack.c.b16 %v1012, %v1011
    %v1258 = vpack.c.b16 %v1014, %v1013
    %v1259 = vpack.c.b16 %v1016, %v1015
    %v1260 = vpack.c.b16 %v1018, %v1017
    %v1261 = vpack.c.b16 %v1020, %v1019
    %v1262 = vpack.c.b16 %v1022, %v1021
    %v1263 = vpack.c.b16 %v1024, %v1023
    %v1264 = vpack.c.b16 %v1026, %v1025
    %v1265 = vpack.c.b16 %v1028, %v1027
    %v1266 = vpack.c.b16 %v1030, %v1029
    %v1267 = vpack.c.b16 %v1032, %v1031
    %v1268 = vpack.c.b16 %v1034, %v1033
    %v1269 = vpack.c.b16 %v1036, %v1035
    %v1270 = vpack.c.b16 %v1038, %v1037
    %v1271 = vpack.c.b16 %v1040, %v1039
    %v1272 = vpack.c.b16 %v1042, %v1041
    %v1273 = vpack.c.b16 %v1044, %v1043
    %v1274 = vpack.c.b16 %v1046, %v1045
    %v1275 = vpack.c.b16 %v1048, %v1047
    %v1276 = vpack.c.b16 %v1050, %v1049
    %v1277 = vpack.c.b16 %v1052, %v1051
    %v1278 = vpack.c.b16 %v1054, %v1053
    %v1279 = vpack.c.b16 %v1056, %v1055
    %v1280 = vpack.c.b16 %v1058, %v1057
    %v1281 = vpack.c.b16 %v1060, %v1059
    %v1282 = vpack.c.b16 %v1062, %v1061
    %v1283 = vpack.c.b16 %v1064, %v1063
    %v1284 = vpack.c.b16 %v1066, %v1065
    %v1285 = vpack.c.b16 %v1068, %v1067
    %v1286 = vpack.c.b16 %v1070, %v1069
    %v1287 = vpack.c.b16 %v1072, %v1071
    %v1288 = vpack.c.b16 %v1074, %v1073
    %v1289 = vpack.c.b16 %v1076, %v1075
    %v1290 = vpack.c.b16 %v1078, %v1077
    %v1291 = vpack.c.b16 %v1080, %v1079
    %v1292 = vpack.c.b16 %v1082, %v1081
    %v1293 = vpack.c.b16 %v1084, %v1083
    %v1294 = vpack.c.b16 %v1086, %v1085
    %v1295 = vpack.c.b16 %v1088, %v1087
    %v1296 = vpack.c.b16 %v1090, %v1089
    %v1297 = vpack.c.b16 %v1092, %v1091
    %v1298 = vpack.c.b16 %v1094, %v1093
    %v1299 = vpack.c.b16 %v1096, %v1095
    %v1300 = vpack.c.b16 %v1098, %v1097
    %v1301 = vpack.c.b16 %v1100, %v1099
    %v1302 = vpack.c.b16 %v1102, %v1101
    %v1303 = vpack.c.b16 %v1104, %v1103
    %v1304 = vpack.c.b16 %v1106, %v1105
    %v1305 = vpack.c.b16 %v1108, %v1107
    %v1306 = vpack.c.b16 %v1110, %v1109
    %v1307 = vpack.c.b16 %v1112, %v1111
    %v1308 = vpack.c.b16 %v1114, %v1113
    %v1309 = vpack.c.b16 %v1116, %v1115
    %v1310 = vpack.c.b16 %v1118, %v1117
    %v1311 = vpack.c.b16 %v1120, %v1119
    %v1312 = vpack.c.b16 %v1122, %v1121
    %v1313 = vpack.c.b16 %v1124, %v1123
    %v1314 = vpack.c.b16 %v1126, %v1125
    %v1315 = vpack.c.b16 %v1128, %v1127
    %v1316 = vpack.c.b16 %v1130, %v1129
    %v1317 = vpack.c.b16 %v1132, %v1131
    %v1318 = vpack.c.b16 %v1134, %v1133
    %v1319 = vpack.c.b16 %v1136, %v1135
    %v1320 = vpack.c.b16 %v1138, %v1137
    %v1321 = vpack.c.b16 %v1140, %v1139
    %v1322 = vpack.c.b16 %v1142, %v1141
    %v1323 = vpack.c.b16 %v1144, %v1143
    %v1324 = vpack.c.b16 %v1146, %v1145
    %v1325 = vpack.c.b16 %v1148, %v1147
    %v1326 = vpack.c.b16 %v1150, %v1149
    %v1327 = vpack.c.b16 %v1152, %v1151
    %v1328 = vpack.c.b16 %v1154, %v1153
    %v1329 = vpack.c.b16 %v1156, %v1155
    %v1330 = vpack.c.b16 %v1158, %v1157
    %v1331 = vpack.c.b16 %v1160, %v1159
    %v1332 = vpack.c.b16 %v1162, %v1161
    %v1333 = vpack.c.b16 %v1164, %v1163
    %v1334 = vpack.c.b16 %v1166, %v1165
    %v1335 = vpack.c.b16 %v1168, %v1167
    %v1336 = vpack.c.b16 %v1170, %v1169
    %v1337 = vpack.c.b16 %v1172, %v1171
    %v1338 = vpack.c.b16 %v1174, %v1173
    %v1339 = vpack.c.b16 %v1176, %v1175
    %v1340 = vpack.c.b16 %v1178, %v1177
    %v1341 = vpack.c.b16 %v1180, %v1179
    %v1342 = vpack.c.b16 %v1182, %v1181
    %v1343 = vpack.c.b16 %v1184, %v1183
    %v1344 = vpack.c.b16 %v1186, %v1185
    %v1345 = vpack.c.b16 %v1188, %v1187
    %v1346 = vpack.c.b16 %v1190, %v1189
    %v1347 = vpack.c.b16 %v1192, %v1191
    %v1348 = vpack.c.b16 %v1194, %v1193
    %v1349 = vpack.c.b16 %v1196, %v1195
    %v1350 = vpack.c.b16 %v1198, %v1197
    %v1351 = vpack.c.b16 %v1200, %v1199
    %v1352 = vpack.c.b16 %v1202, %v1201
    %v1353 = vpack.c.b16 %v1204, %v1203
    %v1354 = vpack.c.b16 %v1206, %v1205
    %v1355 = vpack.c.b16 %v1208, %v1207
    %v1356 = vpack.c.b16 %v1210, %v1209
    %v1357 = vpack.c.b16 %v1212, %v1211
    %v1358 = vpack.c.b16 %v1214, %v1213
    %v1359 = vpack.c.b16 %v1216, %v1215
    %v1360 = vpack.c.b16 %v1218, %v1217
    %v1361 = vpack.c.b16 %v1220, %v1219
    %v1362 = vpack.c.b16 %v1222, %v1221
    %v1363 = vpack.c.b16 %v1224, %v1223
    %v1364 = vpack.c.b16 %v1226, %v1225
    %v1365 = vpack.c.b16 %v1228, %v1227
    %v1366 = vpack.c.b16 %v1230, %v1229
    %v1367 = vpack.c.b16 %v1232, %v1231
    %v1368 = vpack.c.b16 %v1234, %v1233
    %v1369 = vpack.c.b16 %v1236, %v1235
    %v1370 = vpack.c.b16 %v1238, %v1237
    %v1371 = vpack.c.b16 %v1240, %v1239
    %v1372 = vpack.c.b16 %v1242, %v1241
    %v1373 = vpack.c.b16 %v1244, %v1243
    %v1374 = vpack.c.b16 %v1246, %v1245
    %1503 = vmatprep.subr.bf16.mxu0 0
    %1504 = vmatpush1.bf16.msra.mxu0 %v1247
    %1505 = vmatprep.subr.bf16.mxu0 0
    %1506 = vmatpush1.bf16.msra.mxu0 %v1248
    %1507 = vmatprep.subr.bf16.mxu0 0
    %1508 = vmatpush1.bf16.msra.mxu0 %v1249
    %1509 = vmatprep.subr.bf16.mxu0 0
    %1510 = vmatpush1.bf16.msra.mxu0 %v1250
    %1511 = vmatprep.subr.bf16.mxu0 0
    %1512 = vmatpush1.bf16.msra.mxu0 %v1251
    %1513 = vmatprep.subr.bf16.mxu0 0
    %1514 = vmatpush1.bf16.msra.mxu0 %v1252
    %1515 = vmatprep.subr.bf16.mxu0 0
    %1516 = vmatpush1.bf16.msra.mxu0 %v1253
    %1517 = vmatprep.subr.bf16.mxu0 0
    %1518 = vmatpush1.bf16.msra.mxu0 %v1254
    %1519 = vmatprep.subr.bf16.mxu0 0
    %1520 = vmatpush1.bf16.msra.mxu0 %v1255
    %1521 = vmatprep.subr.bf16.mxu0 0
    %1522 = vmatpush1.bf16.msra.mxu0 %v1256
    %1523 = vmatprep.subr.bf16.mxu0 0
    %1524 = vmatpush1.bf16.msra.mxu0 %v1257
    %1525 = vmatprep.subr.bf16.mxu0 0
    %1526 = vmatpush1.bf16.msra.mxu0 %v1258
    %1527 = vmatprep.subr.bf16.mxu0 0
    %1528 = vmatpush1.bf16.msra.mxu0 %v1259
    %1529 = vmatprep.subr.bf16.mxu0 0
    %1530 = vmatpush1.bf16.msra.mxu0 %v1260
    %1531 = vmatprep.subr.bf16.mxu0 0
    %1532 = vmatpush1.bf16.msra.mxu0 %v1261
    %1533 = vmatprep.subr.bf16.mxu0 0
    %1534 = vmatpush1.bf16.msra.mxu0 %v1262
    %1535 = vmatprep.mubr.bf16.mxu0 %v124
    %1536 = vmatmul.mubr.bf16.gmra.mrb[0].mxu0 %v111
    %v1537 = vpop.f32.mrb[0].mxu0
    %v1538 = vadd.f32 0.0, %v1537
    %v1539 = vpop.f32.mrb[0].mxu0
    %v1540 = vpop.f32.mrb[0].mxu0
    %v1541 = vpop.f32.mrb[0].mxu0
    %1542 = vdwg.mxu0
    %1543 = vmatprep.subr.bf16.mxu0 0
    %1544 = vmatpush1.bf16.msra.mxu0 %v1263
    %1545 = vmatprep.subr.bf16.mxu0 0
    %1546 = vmatpush1.bf16.msra.mxu0 %v1264
    %1547 = vmatprep.subr.bf16.mxu0 0
    %1548 = vmatpush1.bf16.msra.mxu0 %v1265
    %1549 = vmatprep.subr.bf16.mxu0 0
    %1550 = vmatpush1.bf16.msra.mxu0 %v1266
    %1551 = vmatprep.subr.bf16.mxu0 0
    %1552 = vmatpush1.bf16.msra.mxu0 %v1267
    %1553 = vmatprep.subr.bf16.mxu0 0
    %1554 = vmatpush1.bf16.msra.mxu0 %v1268
    %1555 = vmatprep.subr.bf16.mxu0 0
    %1556 = vmatpush1.bf16.msra.mxu0 %v1269
    %1557 = vmatprep.subr.bf16.mxu0 0
    %1558 = vmatpush1.bf16.msra.mxu0 %v1270
    %1559 = vmatprep.subr.bf16.mxu0 0
    %1560 = vmatpush1.bf16.msra.mxu0 %v1271
    %1561 = vmatprep.subr.bf16.mxu0 0
    %1562 = vmatpush1.bf16.msra.mxu0 %v1272
    %1563 = vmatprep.subr.bf16.mxu0 0
    %1564 = vmatpush1.bf16.msra.mxu0 %v1273
    %1565 = vmatprep.subr.bf16.mxu0 0
    %1566 = vmatpush1.bf16.msra.mxu0 %v1274
    %1567 = vmatprep.subr.bf16.mxu0 0
    %1568 = vmatpush1.bf16.msra.mxu0 %v1275
    %1569 = vmatprep.subr.bf16.mxu0 0
    %1570 = vmatpush1.bf16.msra.mxu0 %v1276
    %1571 = vmatprep.subr.bf16.mxu0 0
    %1572 = vmatpush1.bf16.msra.mxu0 %v1277
    %1573 = vmatprep.subr.bf16.mxu0 0
    %1574 = vmatpush1.bf16.msra.mxu0 %v1278
    %1575 = vmatprep.mubr.bf16.mxu0 %v126
    %1576 = vmatmul.mubr.bf16.gmra.mrb[0].mxu0 %v125
    %v1577 = vpop.f32.mrb[0].mxu0
    %v1578 = vadd.f32 %v1538, %v1577
    %v1579 = vpop.f32.mrb[0].mxu0
    %v1580 = vpop.f32.mrb[0].mxu0
    %v1581 = vpop.f32.mrb[0].mxu0
    %1582 = vdwg.mxu0
    %1583 = vmatprep.subr.bf16.mxu0 0
    %1584 = vmatpush1.bf16.msra.mxu0 %v1279
    %1585 = vmatprep.subr.bf16.mxu0 0
    %1586 = vmatpush1.bf16.msra.mxu0 %v1280
    %1587 = vmatprep.subr.bf16.mxu0 0
    %1588 = vmatpush1.bf16.msra.mxu0 %v1281
    %1589 = vmatprep.subr.bf16.mxu0 0
    %1590 = vmatpush1.bf16.msra.mxu0 %v1282
    %1591 = vmatprep.subr.bf16.mxu0 0
    %1592 = vmatpush1.bf16.msra.mxu0 %v1283
    %1593 = vmatprep.subr.bf16.mxu0 0
    %1594 = vmatpush1.bf16.msra.mxu0 %v1284
    %1595 = vmatprep.subr.bf16.mxu0 0
    %1596 = vmatpush1.bf16.msra.mxu0 %v1285
    %1597 = vmatprep.subr.bf16.mxu0 0
    %1598 = vmatpush1.bf16.msra.mxu0 %v1286
    %1599 = vmatprep.subr.bf16.mxu0 0
    %1600 = vmatpush1.bf16.msra.mxu0 %v1287
    %1601 = vmatprep.subr.bf16.mxu0 0
    %1602 = vmatpush1.bf16.msra.mxu0 %v1288
    %1603 = vmatprep.subr.bf16.mxu0 0
    %1604 = vmatpush1.bf16.msra.mxu0 %v1289
    %1605 = vmatprep.subr.bf16.mxu0 0
    %1606 = vmatpush1.bf16.msra.mxu0 %v1290
    %1607 = vmatprep.subr.bf16.mxu0 0
    %1608 = vmatpush1.bf16.msra.mxu0 %v1291
    %1609 = vmatprep.subr.bf16.mxu0 0
    %1610 = vmatpush1.bf16.msra.mxu0 %v1292
    %1611 = vmatprep.subr.bf16.mxu0 0
    %1612 = vmatpush1.bf16.msra.mxu0 %v1293
    %1613 = vmatprep.subr.bf16.mxu0 0
    %1614 = vmatpush1.bf16.msra.mxu0 %v1294
    %1615 = vmatprep.mubr.bf16.mxu0 %v156
    %1616 = vmatmul.mubr.bf16.gmra.mrb[0].mxu0 %v143
    %v1617 = vpop.f32.mrb[0].mxu0
    %v1618 = vadd.f32 %v1578, %v1617
    %v1619 = vpop.f32.mrb[0].mxu0
    %v1620 = vpop.f32.mrb[0].mxu0
    %v1621 = vpop.f32.mrb[0].mxu0
    %1622 = vdwg.mxu0
    %1623 = vmatprep.subr.bf16.mxu0 0
    %1624 = vmatpush1.bf16.msra.mxu0 %v1295
    %1625 = vmatprep.subr.bf16.mxu0 0
    %1626 = vmatpush1.bf16.msra.mxu0 %v1296
    %1627 = vmatprep.subr.bf16.mxu0 0
    %1628 = vmatpush1.bf16.msra.mxu0 %v1297
    %1629 = vmatprep.subr.bf16.mxu0 0
    %1630 = vmatpush1.bf16.msra.mxu0 %v1298
    %1631 = vmatprep.subr.bf16.mxu0 0
    %1632 = vmatpush1.bf16.msra.mxu0 %v1299
    %1633 = vmatprep.subr.bf16.mxu0 0
    %1634 = vmatpush1.bf16.msra.mxu0 %v1300
    %1635 = vmatprep.subr.bf16.mxu0 0
    %1636 = vmatpush1.bf16.msra.mxu0 %v1301
    %1637 = vmatprep.subr.bf16.mxu0 0
    %1638 = vmatpush1.bf16.msra.mxu0 %v1302
    %1639 = vmatprep.subr.bf16.mxu0 0
    %1640 = vmatpush1.bf16.msra.mxu0 %v1303
    %1641 = vmatprep.subr.bf16.mxu0 0
    %1642 = vmatpush1.bf16.msra.mxu0 %v1304
    %1643 = vmatprep.subr.bf16.mxu0 0
    %1644 = vmatpush1.bf16.msra.mxu0 %v1305
    %1645 = vmatprep.subr.bf16.mxu0 0
    %1646 = vmatpush1.bf16.msra.mxu0 %v1306
    %1647 = vmatprep.subr.bf16.mxu0 0
    %1648 = vmatpush1.bf16.msra.mxu0 %v1307
    %1649 = vmatprep.subr.bf16.mxu0 0
    %1650 = vmatpush1.bf16.msra.mxu0 %v1308
    %1651 = vmatprep.subr.bf16.mxu0 0
    %1652 = vmatpush1.bf16.msra.mxu0 %v1309
    %1653 = vmatprep.subr.bf16.mxu0 0
    %1654 = vmatpush1.bf16.msra.mxu0 %v1310
    %1655 = vmatprep.mubr.bf16.mxu0 %v158
    %1656 = vmatmul.mubr.bf16.gmra.mrb[0].mxu0 %v157
    %v1657 = vpop.f32.mrb[0].mxu0
    %v1658 = vadd.f32 %v1618, %v1657
    %v1659 = vpop.f32.mrb[0].mxu0
    %v1660 = vpop.f32.mrb[0].mxu0
    %v1661 = vpop.f32.mrb[0].mxu0
    %1662 = vdwg.mxu0
    %1663 = vmatprep.subr.bf16.mxu0 0
    %1664 = vmatpush1.bf16.msra.mxu0 %v1311
    %1665 = vmatprep.subr.bf16.mxu0 0
    %1666 = vmatpush1.bf16.msra.mxu0 %v1312
    %1667 = vmatprep.subr.bf16.mxu0 0
    %1668 = vmatpush1.bf16.msra.mxu0 %v1313
    %1669 = vmatprep.subr.bf16.mxu0 0
    %1670 = vmatpush1.bf16.msra.mxu0 %v1314
    %1671 = vmatprep.subr.bf16.mxu0 0
    %1672 = vmatpush1.bf16.msra.mxu0 %v1315
    %1673 = vmatprep.subr.bf16.mxu0 0
    %1674 = vmatpush1.bf16.msra.mxu0 %v1316
    %1675 = vmatprep.subr.bf16.mxu0 0
    %1676 = vmatpush1.bf16.msra.mxu0 %v1317
    %1677 = vmatprep.subr.bf16.mxu0 0
    %1678 = vmatpush1.bf16.msra.mxu0 %v1318
    %1679 = vmatprep.subr.bf16.mxu0 0
    %1680 = vmatpush1.bf16.msra.mxu0 %v1319
    %1681 = vmatprep.subr.bf16.mxu0 0
    %1682 = vmatpush1.bf16.msra.mxu0 %v1320
    %1683 = vmatprep.subr.bf16.mxu0 0
    %1684 = vmatpush1.bf16.msra.mxu0 %v1321
    %1685 = vmatprep.subr.bf16.mxu0 0
    %1686 = vmatpush1.bf16.msra.mxu0 %v1322
    %1687 = vmatprep.subr.bf16.mxu0 0
    %1688 = vmatpush1.bf16.msra.mxu0 %v1323
    %1689 = vmatprep.subr.bf16.mxu0 0
    %1690 = vmatpush1.bf16.msra.mxu0 %v1324
    %1691 = vmatprep.subr.bf16.mxu0 0
    %1692 = vmatpush1.bf16.msra.mxu0 %v1325
    %1693 = vmatprep.subr.bf16.mxu0 0
    %1694 = vmatpush1.bf16.msra.mxu0 %v1326
    %1695 = vmatprep.mubr.bf16.mxu0 %v188
    %1696 = vmatmul.mubr.bf16.gmra.mrb[0].mxu0 %v175
    %v1697 = vpop.f32.mrb[0].mxu0
    %v1698 = vadd.f32 %v1658, %v1697
    %v1699 = vpop.f32.mrb[0].mxu0
    %v1700 = vpop.f32.mrb[0].mxu0
    %v1701 = vpop.f32.mrb[0].mxu0
    %1702 = vdwg.mxu0
    %1703 = vmatprep.subr.bf16.mxu0 0
    %1704 = vmatpush1.bf16.msra.mxu0 %v1327
    %1705 = vmatprep.subr.bf16.mxu0 0
    %1706 = vmatpush1.bf16.msra.mxu0 %v1328
    %1707 = vmatprep.subr.bf16.mxu0 0
    %1708 = vmatpush1.bf16.msra.mxu0 %v1329
    %1709 = vmatprep.subr.bf16.mxu0 0
    %1710 = vmatpush1.bf16.msra.mxu0 %v1330
    %1711 = vmatprep.subr.bf16.mxu0 0
    %1712 = vmatpush1.bf16.msra.mxu0 %v1331
    %1713 = vmatprep.subr.bf16.mxu0 0
    %1714 = vmatpush1.bf16.msra.mxu0 %v1332
    %1715 = vmatprep.subr.bf16.mxu0 0
    %1716 = vmatpush1.bf16.msra.mxu0 %v1333
    %1717 = vmatprep.subr.bf16.mxu0 0
    %1718 = vmatpush1.bf16.msra.mxu0 %v1334
    %1719 = vmatprep.subr.bf16.mxu0 0
    %1720 = vmatpush1.bf16.msra.mxu0 %v1335
    %1721 = vmatprep.subr.bf16.mxu0 0
    %1722 = vmatpush1.bf16.msra.mxu0 %v1336
    %1723 = vmatprep.subr.bf16.mxu0 0
    %1724 = vmatpush1.bf16.msra.mxu0 %v1337
    %1725 = vmatprep.subr.bf16.mxu0 0
    %1726 = vmatpush1.bf16.msra.mxu0 %v1338
    %1727 = vmatprep.subr.bf16.mxu0 0
    %1728 = vmatpush1.bf16.msra.mxu0 %v1339
    %1729 = vmatprep.subr.bf16.mxu0 0
    %1730 = vmatpush1.bf16.msra.mxu0 %v1340
    %1731 = vmatprep.subr.bf16.mxu0 0
    %1732 = vmatpush1.bf16.msra.mxu0 %v1341
    %1733 = vmatprep.subr.bf16.mxu0 0
    %1734 = vmatpush1.bf16.msra.mxu0 %v1342
    %1735 = vmatprep.mubr.bf16.mxu0 %v190
    %1736 = vmatmul.mubr.bf16.gmra.mrb[0].mxu0 %v189
    %v1737 = vpop.f32.mrb[0].mxu0
    %v1738 = vadd.f32 %v1698, %v1737
    %v1739 = vpop.f32.mrb[0].mxu0
    %v1740 = vpop.f32.mrb[0].mxu0
    %v1741 = vpop.f32.mrb[0].mxu0
    %1742 = vdwg.mxu0
    %1743 = vmatprep.subr.bf16.mxu0 0
    %1744 = vmatpush1.bf16.msra.mxu0 %v1343
    %1745 = vmatprep.subr.bf16.mxu0 0
    %1746 = vmatpush1.bf16.msra.mxu0 %v1344
    %1747 = vmatprep.subr.bf16.mxu0 0
    %1748 = vmatpush1.bf16.msra.mxu0 %v1345
    %1749 = vmatprep.subr.bf16.mxu0 0
    %1750 = vmatpush1.bf16.msra.mxu0 %v1346
    %1751 = vmatprep.subr.bf16.mxu0 0
    %1752 = vmatpush1.bf16.msra.mxu0 %v1347
    %1753 = vmatprep.subr.bf16.mxu0 0
    %1754 = vmatpush1.bf16.msra.mxu0 %v1348
    %1755 = vmatprep.subr.bf16.mxu0 0
    %1756 = vmatpush1.bf16.msra.mxu0 %v1349
    %1757 = vmatprep.subr.bf16.mxu0 0
    %1758 = vmatpush1.bf16.msra.mxu0 %v1350
    %1759 = vmatprep.subr.bf16.mxu0 0
    %1760 = vmatpush1.bf16.msra.mxu0 %v1351
    %1761 = vmatprep.subr.bf16.mxu0 0
    %1762 = vmatpush1.bf16.msra.mxu0 %v1352
    %1763 = vmatprep.subr.bf16.mxu0 0
    %1764 = vmatpush1.bf16.msra.mxu0 %v1353
    %1765 = vmatprep.subr.bf16.mxu0 0
    %1766 = vmatpush1.bf16.msra.mxu0 %v1354
    %1767 = vmatprep.subr.bf16.mxu0 0
    %1768 = vmatpush1.bf16.msra.mxu0 %v1355
    %1769 = vmatprep.subr.bf16.mxu0 0
    %1770 = vmatpush1.bf16.msra.mxu0 %v1356
    %1771 = vmatprep.subr.bf16.mxu0 0
    %1772 = vmatpush1.bf16.msra.mxu0 %v1357
    %1773 = vmatprep.subr.bf16.mxu0 0
    %1774 = vmatpush1.bf16.msra.mxu0 %v1358
    %1775 = vmatprep.mubr.bf16.mxu0 %v220
    %1776 = vmatmul.mubr.bf16.gmra.mrb[0].mxu0 %v207
    %v1777 = vpop.f32.mrb[0].mxu0
    %v1778 = vadd.f32 %v1738, %v1777
    %v1779 = vpop.f32.mrb[0].mxu0
    %v1780 = vpop.f32.mrb[0].mxu0
    %v1781 = vpop.f32.mrb[0].mxu0
    %1782 = vdwg.mxu0
    %1783 = vmatprep.subr.bf16.mxu0 0
    %1784 = vmatpush1.bf16.msra.mxu0 %v1359
    %1785 = vmatprep.subr.bf16.mxu0 0
    %1786 = vmatpush1.bf16.msra.mxu0 %v1360
    %1787 = vmatprep.subr.bf16.mxu0 0
    %1788 = vmatpush1.bf16.msra.mxu0 %v1361
    %1789 = vmatprep.subr.bf16.mxu0 0
    %1790 = vmatpush1.bf16.msra.mxu0 %v1362
    %1791 = vmatprep.subr.bf16.mxu0 0
    %1792 = vmatpush1.bf16.msra.mxu0 %v1363
    %1793 = vmatprep.subr.bf16.mxu0 0
    %1794 = vmatpush1.bf16.msra.mxu0 %v1364
    %1795 = vmatprep.subr.bf16.mxu0 0
    %1796 = vmatpush1.bf16.msra.mxu0 %v1365
    %1797 = vmatprep.subr.bf16.mxu0 0
    %1798 = vmatpush1.bf16.msra.mxu0 %v1366
    %1799 = vmatprep.subr.bf16.mxu0 0
    %1800 = vmatpush1.bf16.msra.mxu0 %v1367
    %1801 = vmatprep.subr.bf16.mxu0 0
    %1802 = vmatpush1.bf16.msra.mxu0 %v1368
    %1803 = vmatprep.subr.bf16.mxu0 0
    %1804 = vmatpush1.bf16.msra.mxu0 %v1369
    %1805 = vmatprep.subr.bf16.mxu0 0
    %1806 = vmatpush1.bf16.msra.mxu0 %v1370
    %1807 = vmatprep.subr.bf16.mxu0 0
    %1808 = vmatpush1.bf16.msra.mxu0 %v1371
    %1809 = vmatprep.subr.bf16.mxu0 0
    %1810 = vmatpush1.bf16.msra.mxu0 %v1372
    %1811 = vmatprep.subr.bf16.mxu0 0
    %1812 = vmatpush1.bf16.msra.mxu0 %v1373
    %1813 = vmatprep.subr.bf16.mxu0 0
    %1814 = vmatpush1.bf16.msra.mxu0 %v1374
    %1815 = vmatprep.mubr.bf16.mxu0 %v222
    %1816 = vmatmul.mubr.bf16.gmra.mrb[0].mxu0 %v221
    %v1817 = vpop.f32.mrb[0].mxu0
    %v1818 = vadd.f32 %v1778, %v1817
    %v1819 = vpop.f32.mrb[0].mxu0
    %v1820 = vpop.f32.mrb[0].mxu0
    %v1821 = vpop.f32.mrb[0].mxu0
    %1822 = vdwg.mxu0
    %v2079 = vunpack.c.l.b16 %v223
    %v2080 = vunpack.c.l.b16 %v224
    %v2081 = vunpack.c.l.b16 %v225
    %v2082 = vunpack.c.l.b16 %v226
    %v2083 = vunpack.c.l.b16 %v227
    %v2084 = vunpack.c.l.b16 %v228
    %v2085 = vunpack.c.l.b16 %v229
    %v2086 = vunpack.c.l.b16 %v230
    %v2087 = vunpack.c.l.b16 %v231
    %v2088 = vunpack.c.l.b16 %v232
    %v2089 = vunpack.c.l.b16 %v233
    %v2090 = vunpack.c.l.b16 %v234
    %v2091 = vunpack.c.l.b16 %v235
    %v2092 = vunpack.c.l.b16 %v236
    %v2093 = vunpack.c.l.b16 %v237
    %v2094 = vunpack.c.l.b16 %v238
    %v2095 = vunpack.c.l.b16 %v239
    %v2096 = vunpack.c.l.b16 %v240
    %v2097 = vunpack.c.l.b16 %v241
    %v2098 = vunpack.c.l.b16 %v242
    %v2099 = vunpack.c.l.b16 %v243
    %v2100 = vunpack.c.l.b16 %v244
    %v2101 = vunpack.c.l.b16 %v245
    %v2102 = vunpack.c.l.b16 %v246
    %v2103 = vunpack.c.l.b16 %v247
    %v2104 = vunpack.c.l.b16 %v248
    %v2105 = vunpack.c.l.b16 %v249
    %v2106 = vunpack.c.l.b16 %v250
    %v2107 = vunpack.c.l.b16 %v251
    %v2108 = vunpack.c.l.b16 %v252
    %v2109 = vunpack.c.l.b16 %v253
    %v2110 = vunpack.c.l.b16 %v254
    %v2111 = vunpack.c.l.b16 %v255
    %v2112 = vunpack.c.l.b16 %v256
    %v2113 = vunpack.c.l.b16 %v257
    %v2114 = vunpack.c.l.b16 %v258
    %v2115 = vunpack.c.l.b16 %v259
    %v2116 = vunpack.c.l.b16 %v260
    %v2117 = vunpack.c.l.b16 %v261
    %v2118 = vunpack.c.l.b16 %v262
    %v2119 = vunpack.c.l.b16 %v263
    %v2120 = vunpack.c.l.b16 %v264
    %v2121 = vunpack.c.l.b16 %v265
    %v2122 = vunpack.c.l.b16 %v266
    %v2123 = vunpack.c.l.b16 %v267
    %v2124 = vunpack.c.l.b16 %v268
    %v2125 = vunpack.c.l.b16 %v269
    %v2126 = vunpack.c.l.b16 %v270
    %v2127 = vunpack.c.l.b16 %v271
    %v2128 = vunpack.c.l.b16 %v272
    %v2129 = vunpack.c.l.b16 %v273
    %v2130 = vunpack.c.l.b16 %v274
    %v2131 = vunpack.c.l.b16 %v275
    %v2132 = vunpack.c.l.b16 %v276
    %v2133 = vunpack.c.l.b16 %v277
    %v2134 = vunpack.c.l.b16 %v278
    %v2135 = vunpack.c.l.b16 %v279
    %v2136 = vunpack.c.l.b16 %v280
    %v2137 = vunpack.c.l.b16 %v281
    %v2138 = vunpack.c.l.b16 %v282
    %v2139 = vunpack.c.l.b16 %v283
    %v2140 = vunpack.c.l.b16 %v284
    %v2141 = vunpack.c.l.b16 %v285
    %v2142 = vunpack.c.l.b16 %v286
    %v2143 = vunpack.c.l.b16 %v287
    %v2144 = vunpack.c.l.b16 %v288
    %v2145 = vunpack.c.l.b16 %v289
    %v2146 = vunpack.c.l.b16 %v290
    %v2147 = vunpack.c.l.b16 %v291
    %v2148 = vunpack.c.l.b16 %v292
    %v2149 = vunpack.c.l.b16 %v293
    %v2150 = vunpack.c.l.b16 %v294
    %v2151 = vunpack.c.l.b16 %v295
    %v2152 = vunpack.c.l.b16 %v296
    %v2153 = vunpack.c.l.b16 %v297
    %v2154 = vunpack.c.l.b16 %v298
    %v2155 = vunpack.c.l.b16 %v299
    %v2156 = vunpack.c.l.b16 %v300
    %v2157 = vunpack.c.l.b16 %v301
    %v2158 = vunpack.c.l.b16 %v302
    %v2159 = vunpack.c.l.b16 %v303
    %v2160 = vunpack.c.l.b16 %v304
    %v2161 = vunpack.c.l.b16 %v305
    %v2162 = vunpack.c.l.b16 %v306
    %v2163 = vunpack.c.l.b16 %v307
    %v2164 = vunpack.c.l.b16 %v308
    %v2165 = vunpack.c.l.b16 %v309
    %v2166 = vunpack.c.l.b16 %v310
    %v2167 = vunpack.c.l.b16 %v311
    %v2168 = vunpack.c.l.b16 %v312
    %v2169 = vunpack.c.l.b16 %v313
    %v2170 = vunpack.c.l.b16 %v314
    %v2171 = vunpack.c.l.b16 %v315
    %v2172 = vunpack.c.l.b16 %v316
    %v2173 = vunpack.c.l.b16 %v317
    %v2174 = vunpack.c.l.b16 %v318
    %v2175 = vunpack.c.l.b16 %v319
    %v2176 = vunpack.c.l.b16 %v320
    %v2177 = vunpack.c.l.b16 %v321
    %v2178 = vunpack.c.l.b16 %v322
    %v2179 = vunpack.c.l.b16 %v323
    %v2180 = vunpack.c.l.b16 %v324
    %v2181 = vunpack.c.l.b16 %v325
    %v2182 = vunpack.c.l.b16 %v326
    %v2183 = vunpack.c.l.b16 %v327
    %v2184 = vunpack.c.l.b16 %v328
    %v2185 = vunpack.c.l.b16 %v329
    %v2186 = vunpack.c.l.b16 %v330
    %v2187 = vunpack.c.l.b16 %v331
    %v2188 = vunpack.c.l.b16 %v332
    %v2189 = vunpack.c.l.b16 %v333
    %v2190 = vunpack.c.l.b16 %v334
    %v2191 = vunpack.c.l.b16 %v335
    %v2192 = vunpack.c.l.b16 %v336
    %v2193 = vunpack.c.l.b16 %v337
    %v2194 = vunpack.c.l.b16 %v338
    %v2195 = vunpack.c.l.b16 %v339
    %v2196 = vunpack.c.l.b16 %v340
    %v2197 = vunpack.c.l.b16 %v341
    %v2198 = vunpack.c.l.b16 %v342
    %v2199 = vunpack.c.l.b16 %v343
    %v2200 = vunpack.c.l.b16 %v344
    %v2201 = vunpack.c.l.b16 %v345
    %v2202 = vunpack.c.l.b16 %v346
    %v2203 = vunpack.c.l.b16 %v347
    %v2204 = vunpack.c.l.b16 %v348
    %v2205 = vunpack.c.l.b16 %v349
    %v2206 = vunpack.c.l.b16 %v350
    %v2207 = vunpack.c.l.b16 %v351
    %v2208 = vunpack.c.l.b16 %v352
    %v2209 = vunpack.c.l.b16 %v353
    %v2210 = vunpack.c.l.b16 %v354
    %v2211 = vunpack.c.l.b16 %v355
    %v2212 = vunpack.c.l.b16 %v356
    %v2213 = vunpack.c.l.b16 %v357
    %v2214 = vunpack.c.l.b16 %v358
    %v2215 = vunpack.c.l.b16 %v359
    %v2216 = vunpack.c.l.b16 %v360
    %v2217 = vunpack.c.l.b16 %v361
    %v2218 = vunpack.c.l.b16 %v362
    %v2219 = vunpack.c.l.b16 %v363
    %v2220 = vunpack.c.l.b16 %v364
    %v2221 = vunpack.c.l.b16 %v365
    %v2222 = vunpack.c.l.b16 %v366
    %v2223 = vunpack.c.l.b16 %v367
    %v2224 = vunpack.c.l.b16 %v368
    %v2225 = vunpack.c.l.b16 %v369
    %v2226 = vunpack.c.l.b16 %v370
    %v2227 = vunpack.c.l.b16 %v371
    %v2228 = vunpack.c.l.b16 %v372
    %v2229 = vunpack.c.l.b16 %v373
    %v2230 = vunpack.c.l.b16 %v374
    %v2231 = vunpack.c.l.b16 %v375
    %v2232 = vunpack.c.l.b16 %v376
    %v2233 = vunpack.c.l.b16 %v377
    %v2234 = vunpack.c.l.b16 %v378
    %v2235 = vunpack.c.l.b16 %v379
    %v2236 = vunpack.c.l.b16 %v380
    %v2237 = vunpack.c.l.b16 %v381
    %v2238 = vunpack.c.l.b16 %v382
    %v2239 = vunpack.c.l.b16 %v383
    %v2240 = vunpack.c.l.b16 %v384
    %v2241 = vunpack.c.l.b16 %v385
    %v2242 = vunpack.c.l.b16 %v386
    %v2243 = vunpack.c.l.b16 %v387
    %v2244 = vunpack.c.l.b16 %v388
    %v2245 = vunpack.c.l.b16 %v389
    %v2246 = vunpack.c.l.b16 %v390
    %v2247 = vunpack.c.l.b16 %v391
    %v2248 = vunpack.c.l.b16 %v392
    %v2249 = vunpack.c.l.b16 %v393
    %v2250 = vunpack.c.l.b16 %v394
    %v2251 = vunpack.c.l.b16 %v395
    %v2252 = vunpack.c.l.b16 %v396
    %v2253 = vunpack.c.l.b16 %v397
    %v2254 = vunpack.c.l.b16 %v398
    %v2255 = vunpack.c.l.b16 %v399
    %v2256 = vunpack.c.l.b16 %v400
    %v2257 = vunpack.c.l.b16 %v401
    %v2258 = vunpack.c.l.b16 %v402
    %v2259 = vunpack.c.l.b16 %v403
    %v2260 = vunpack.c.l.b16 %v404
    %v2261 = vunpack.c.l.b16 %v405
    %v2262 = vunpack.c.l.b16 %v406
    %v2263 = vunpack.c.l.b16 %v407
    %v2264 = vunpack.c.l.b16 %v408
    %v2265 = vunpack.c.l.b16 %v409
    %v2266 = vunpack.c.l.b16 %v410
    %v2267 = vunpack.c.l.b16 %v411
    %v2268 = vunpack.c.l.b16 %v412
    %v2269 = vunpack.c.l.b16 %v413
    %v2270 = vunpack.c.l.b16 %v414
    %v2271 = vunpack.c.l.b16 %v415
    %v2272 = vunpack.c.l.b16 %v416
    %v2273 = vunpack.c.l.b16 %v417
    %v2274 = vunpack.c.l.b16 %v418
    %v2275 = vunpack.c.l.b16 %v419
    %v2276 = vunpack.c.l.b16 %v420
    %v2277 = vunpack.c.l.b16 %v421
    %v2278 = vunpack.c.l.b16 %v422
    %v2279 = vunpack.c.l.b16 %v423
    %v2280 = vunpack.c.l.b16 %v424
    %v2281 = vunpack.c.l.b16 %v425
    %v2282 = vunpack.c.l.b16 %v426
    %v2283 = vunpack.c.l.b16 %v427
    %v2284 = vunpack.c.l.b16 %v428
    %v2285 = vunpack.c.l.b16 %v429
    %v2286 = vunpack.c.l.b16 %v430
    %v2287 = vunpack.c.l.b16 %v431
    %v2288 = vunpack.c.l.b16 %v432
    %v2289 = vunpack.c.l.b16 %v433
    %v2290 = vunpack.c.l.b16 %v434
    %v2291 = vunpack.c.l.b16 %v435
    %v2292 = vunpack.c.l.b16 %v436
    %v2293 = vunpack.c.l.b16 %v437
    %v2294 = vunpack.c.l.b16 %v438
    %v2295 = vunpack.c.l.b16 %v439
    %v2296 = vunpack.c.l.b16 %v440
    %v2297 = vunpack.c.l.b16 %v441
    %v2298 = vunpack.c.l.b16 %v442
    %v2299 = vunpack.c.l.b16 %v443
    %v2300 = vunpack.c.l.b16 %v444
    %v2301 = vunpack.c.l.b16 %v445
    %v2302 = vunpack.c.l.b16 %v446
    %v2303 = vunpack.c.l.b16 %v447
    %v2304 = vunpack.c.l.b16 %v448
    %v2305 = vunpack.c.l.b16 %v449
    %v2306 = vunpack.c.l.b16 %v450
    %v2307 = vunpack.c.l.b16 %v451
    %v2308 = vunpack.c.l.b16 %v452
    %v2309 = vunpack.c.l.b16 %v453
    %v2310 = vunpack.c.l.b16 %v454
    %v2311 = vunpack.c.l.b16 %v455
    %v2312 = vunpack.c.l.b16 %v456
    %v2313 = vunpack.c.l.b16 %v457
    %v2314 = vunpack.c.l.b16 %v458
    %v2315 = vunpack.c.l.b16 %v459
    %v2316 = vunpack.c.l.b16 %v460
    %v2317 = vunpack.c.l.b16 %v461
    %v2318 = vunpack.c.l.b16 %v462
    %v2319 = vunpack.c.l.b16 %v463
    %v2320 = vunpack.c.l.b16 %v464
    %v2321 = vunpack.c.l.b16 %v465
    %v2322 = vunpack.c.l.b16 %v466
    %v2323 = vunpack.c.l.b16 %v467
    %v2324 = vunpack.c.l.b16 %v468
    %v2325 = vunpack.c.l.b16 %v469
    %v2326 = vunpack.c.l.b16 %v470
    %v2327 = vunpack.c.l.b16 %v471
    %v2328 = vunpack.c.l.b16 %v472
    %v2329 = vunpack.c.l.b16 %v473
    %v2330 = vunpack.c.l.b16 %v474
    %v2331 = vunpack.c.l.b16 %v475
    %v2332 = vunpack.c.l.b16 %v476
    %v2333 = vunpack.c.l.b16 %v477
    %v2334 = vunpack.c.l.b16 %v478
    %v2335 = vpack.c.b16 %v2080, %v2079
    %v2336 = vpack.c.b16 %v2082, %v2081
    %v2337 = vpack.c.b16 %v2084, %v2083
    %v2338 = vpack.c.b16 %v2086, %v2085
    %v2339 = vpack.c.b16 %v2088, %v2087
    %v2340 = vpack.c.b16 %v2090, %v2089
    %v2341 = vpack.c.b16 %v2092, %v2091
    %v2342 = vpack.c.b16 %v2094, %v2093
    %v2343 = vpack.c.b16 %v2096, %v2095
    %v2344 = vpack.c.b16 %v2098, %v2097
    %v2345 = vpack.c.b16 %v2100, %v2099
    %v2346 = vpack.c.b16 %v2102, %v2101
    %v2347 = vpack.c.b16 %v2104, %v2103
    %v2348 = vpack.c.b16 %v2106, %v2105
    %v2349 = vpack.c.b16 %v2108, %v2107
    %v2350 = vpack.c.b16 %v2110, %v2109
    %v2351 = vpack.c.b16 %v2112, %v2111
    %v2352 = vpack.c.b16 %v2114, %v2113
    %v2353 = vpack.c.b16 %v2116, %v2115
    %v2354 = vpack.c.b16 %v2118, %v2117
    %v2355 = vpack.c.b16 %v2120, %v2119
    %v2356 = vpack.c.b16 %v2122, %v2121
    %v2357 = vpack.c.b16 %v2124, %v2123
    %v2358 = vpack.c.b16 %v2126, %v2125
    %v2359 = vpack.c.b16 %v2128, %v2127
    %v2360 = vpack.c.b16 %v2130, %v2129
    %v2361 = vpack.c.b16 %v2132, %v2131
    %v2362 = vpack.c.b16 %v2134, %v2133
    %v2363 = vpack.c.b16 %v2136, %v2135
    %v2364 = vpack.c.b16 %v2138, %v2137
    %v2365 = vpack.c.b16 %v2140, %v2139
    %v2366 = vpack.c.b16 %v2142, %v2141
    %v2367 = vpack.c.b16 %v2144, %v2143
    %v2368 = vpack.c.b16 %v2146, %v2145
    %v2369 = vpack.c.b16 %v2148, %v2147
    %v2370 = vpack.c.b16 %v2150, %v2149
    %v2371 = vpack.c.b16 %v2152, %v2151
    %v2372 = vpack.c.b16 %v2154, %v2153
    %v2373 = vpack.c.b16 %v2156, %v2155
    %v2374 = vpack.c.b16 %v2158, %v2157
    %v2375 = vpack.c.b16 %v2160, %v2159
    %v2376 = vpack.c.b16 %v2162, %v2161
    %v2377 = vpack.c.b16 %v2164, %v2163
    %v2378 = vpack.c.b16 %v2166, %v2165
    %v2379 = vpack.c.b16 %v2168, %v2167
    %v2380 = vpack.c.b16 %v2170, %v2169
    %v2381 = vpack.c.b16 %v2172, %v2171
    %v2382 = vpack.c.b16 %v2174, %v2173
    %v2383 = vpack.c.b16 %v2176, %v2175
    %v2384 = vpack.c.b16 %v2178, %v2177
    %v2385 = vpack.c.b16 %v2180, %v2179
    %v2386 = vpack.c.b16 %v2182, %v2181
    %v2387 = vpack.c.b16 %v2184, %v2183
    %v2388 = vpack.c.b16 %v2186, %v2185
    %v2389 = vpack.c.b16 %v2188, %v2187
    %v2390 = vpack.c.b16 %v2190, %v2189
    %v2391 = vpack.c.b16 %v2192, %v2191
    %v2392 = vpack.c.b16 %v2194, %v2193
    %v2393 = vpack.c.b16 %v2196, %v2195
    %v2394 = vpack.c.b16 %v2198, %v2197
    %v2395 = vpack.c.b16 %v2200, %v2199
    %v2396 = vpack.c.b16 %v2202, %v2201
    %v2397 = vpack.c.b16 %v2204, %v2203
    %v2398 = vpack.c.b16 %v2206, %v2205
    %v2399 = vpack.c.b16 %v2208, %v2207
    %v2400 = vpack.c.b16 %v2210, %v2209
    %v2401 = vpack.c.b16 %v2212, %v2211
    %v2402 = vpack.c.b16 %v2214, %v2213
    %v2403 = vpack.c.b16 %v2216, %v2215
    %v2404 = vpack.c.b16 %v2218, %v2217
    %v2405 = vpack.c.b16 %v2220, %v2219
    %v2406 = vpack.c.b16 %v2222, %v2221
    %v2407 = vpack.c.b16 %v2224, %v2223
    %v2408 = vpack.c.b16 %v2226, %v2225
    %v2409 = vpack.c.b16 %v2228, %v2227
    %v2410 = vpack.c.b16 %v2230, %v2229
    %v2411 = vpack.c.b16 %v2232, %v2231
    %v2412 = vpack.c.b16 %v2234, %v2233
    %v2413 = vpack.c.b16 %v2236, %v2235
    %v2414 = vpack.c.b16 %v2238, %v2237
    %v2415 = vpack.c.b16 %v2240, %v2239
    %v2416 = vpack.c.b16 %v2242, %v2241
    %v2417 = vpack.c.b16 %v2244, %v2243
    %v2418 = vpack.c.b16 %v2246, %v2245
    %v2419 = vpack.c.b16 %v2248, %v2247
    %v2420 = vpack.c.b16 %v2250, %v2249
    %v2421 = vpack.c.b16 %v2252, %v2251
    %v2422 = vpack.c.b16 %v2254, %v2253
    %v2423 = vpack.c.b16 %v2256, %v2255
    %v2424 = vpack.c.b16 %v2258, %v2257
    %v2425 = vpack.c.b16 %v2260, %v2259
    %v2426 = vpack.c.b16 %v2262, %v2261
    %v2427 = vpack.c.b16 %v2264, %v2263
    %v2428 = vpack.c.b16 %v2266, %v2265
    %v2429 = vpack.c.b16 %v2268, %v2267
    %v2430 = vpack.c.b16 %v2270, %v2269
    %v2431 = vpack.c.b16 %v2272, %v2271
    %v2432 = vpack.c.b16 %v2274, %v2273
    %v2433 = vpack.c.b16 %v2276, %v2275
    %v2434 = vpack.c.b16 %v2278, %v2277
    %v2435 = vpack.c.b16 %v2280, %v2279
    %v2436 = vpack.c.b16 %v2282, %v2281
    %v2437 = vpack.c.b16 %v2284, %v2283
    %v2438 = vpack.c.b16 %v2286, %v2285
    %v2439 = vpack.c.b16 %v2288, %v2287
    %v2440 = vpack.c.b16 %v2290, %v2289
    %v2441 = vpack.c.b16 %v2292, %v2291
    %v2442 = vpack.c.b16 %v2294, %v2293
    %v2443 = vpack.c.b16 %v2296, %v2295
    %v2444 = vpack.c.b16 %v2298, %v2297
    %v2445 = vpack.c.b16 %v2300, %v2299
    %v2446 = vpack.c.b16 %v2302, %v2301
    %v2447 = vpack.c.b16 %v2304, %v2303
    %v2448 = vpack.c.b16 %v2306, %v2305
    %v2449 = vpack.c.b16 %v2308, %v2307
    %v2450 = vpack.c.b16 %v2310, %v2309
    %v2451 = vpack.c.b16 %v2312, %v2311
    %v2452 = vpack.c.b16 %v2314, %v2313
    %v2453 = vpack.c.b16 %v2316, %v2315
    %v2454 = vpack.c.b16 %v2318, %v2317
    %v2455 = vpack.c.b16 %v2320, %v2319
    %v2456 = vpack.c.b16 %v2322, %v2321
    %v2457 = vpack.c.b16 %v2324, %v2323
    %v2458 = vpack.c.b16 %v2326, %v2325
    %v2459 = vpack.c.b16 %v2328, %v2327
    %v2460 = vpack.c.b16 %v2330, %v2329
    %v2461 = vpack.c.b16 %v2332, %v2331
    %v2462 = vpack.c.b16 %v2334, %v2333
    %2591 = vmatprep.subr.bf16.mxu0 0
    %2592 = vmatpush1.bf16.msra.mxu0 %v2335
    %2593 = vmatprep.subr.bf16.mxu0 0
    %2594 = vmatpush1.bf16.msra.mxu0 %v2336
    %2595 = vmatprep.subr.bf16.mxu0 0
    %2596 = vmatpush1.bf16.msra.mxu0 %v2337
    %2597 = vmatprep.subr.bf16.mxu0 0
    %2598 = vmatpush1.bf16.msra.mxu0 %v2338
    %2599 = vmatprep.subr.bf16.mxu0 0
    %2600 = vmatpush1.bf16.msra.mxu0 %v2339
    %2601 = vmatprep.subr.bf16.mxu0 0
    %2602 = vmatpush1.bf16.msra.mxu0 %v2340
    %2603 = vmatprep.subr.bf16.mxu0 0
    %2604 = vmatpush1.bf16.msra.mxu0 %v2341
    %2605 = vmatprep.subr.bf16.mxu0 0
    %2606 = vmatpush1.bf16.msra.mxu0 %v2342
    %2607 = vmatprep.subr.bf16.mxu0 0
    %2608 = vmatpush1.bf16.msra.mxu0 %v2343
    %2609 = vmatprep.subr.bf16.mxu0 0
    %2610 = vmatpush1.bf16.msra.mxu0 %v2344
    %2611 = vmatprep.subr.bf16.mxu0 0
    %2612 = vmatpush1.bf16.msra.mxu0 %v2345
    %2613 = vmatprep.subr.bf16.mxu0 0
    %2614 = vmatpush1.bf16.msra.mxu0 %v2346
    %2615 = vmatprep.subr.bf16.mxu0 0
    %2616 = vmatpush1.bf16.msra.mxu0 %v2347
    %2617 = vmatprep.subr.bf16.mxu0 0
    %2618 = vmatpush1.bf16.msra.mxu0 %v2348
    %2619 = vmatprep.subr.bf16.mxu0 0
    %2620 = vmatpush1.bf16.msra.mxu0 %v2349
    %2621 = vmatprep.subr.bf16.mxu0 0
    %2622 = vmatpush1.bf16.msra.mxu0 %v2350
    %2623 = vmatprep.mubr.bf16.mxu0 %v124
    %2624 = vmatmul.mubr.bf16.gmra.mrb[0].mxu0 %v111
    %v2625 = vpop.f32.mrb[0].mxu0
    %v2626 = vadd.f32 %v1818, %v2625
    %v2627 = vpop.f32.mrb[0].mxu0
    %v2628 = vpop.f32.mrb[0].mxu0
    %v2629 = vpop.f32.mrb[0].mxu0
    %2630 = vdwg.mxu0
    %2631 = vmatprep.subr.bf16.mxu0 0
    %2632 = vmatpush1.bf16.msra.mxu0 %v2351
    %2633 = vmatprep.subr.bf16.mxu0 0
    %2634 = vmatpush1.bf16.msra.mxu0 %v2352
    %2635 = vmatprep.subr.bf16.mxu0 0
    %2636 = vmatpush1.bf16.msra.mxu0 %v2353
    %2637 = vmatprep.subr.bf16.mxu0 0
    %2638 = vmatpush1.bf16.msra.mxu0 %v2354
    %2639 = vmatprep.subr.bf16.mxu0 0
    %2640 = vmatpush1.bf16.msra.mxu0 %v2355
    %2641 = vmatprep.subr.bf16.mxu0 0
    %2642 = vmatpush1.bf16.msra.mxu0 %v2356
    %2643 = vmatprep.subr.bf16.mxu0 0
    %2644 = vmatpush1.bf16.msra.mxu0 %v2357
    %2645 = vmatprep.subr.bf16.mxu0 0
    %2646 = vmatpush1.bf16.msra.mxu0 %v2358
    %2647 = vmatprep.subr.bf16.mxu0 0
    %2648 = vmatpush1.bf16.msra.mxu0 %v2359
    %2649 = vmatprep.subr.bf16.mxu0 0
    %2650 = vmatpush1.bf16.msra.mxu0 %v2360
    %2651 = vmatprep.subr.bf16.mxu0 0
    %2652 = vmatpush1.bf16.msra.mxu0 %v2361
    %2653 = vmatprep.subr.bf16.mxu0 0
    %2654 = vmatpush1.bf16.msra.mxu0 %v2362
    %2655 = vmatprep.subr.bf16.mxu0 0
    %2656 = vmatpush1.bf16.msra.mxu0 %v2363
    %2657 = vmatprep.subr.bf16.mxu0 0
    %2658 = vmatpush1.bf16.msra.mxu0 %v2364
    %2659 = vmatprep.subr.bf16.mxu0 0
    %2660 = vmatpush1.bf16.msra.mxu0 %v2365
    %2661 = vmatprep.subr.bf16.mxu0 0
    %2662 = vmatpush1.bf16.msra.mxu0 %v2366
    %2663 = vmatprep.mubr.bf16.mxu0 %v126
    %2664 = vmatmul.mubr.bf16.gmra.mrb[0].mxu0 %v125
    %v2665 = vpop.f32.mrb[0].mxu0
    %v2666 = vadd.f32 %v2626, %v2665
    %v2667 = vpop.f32.mrb[0].mxu0
    %v2668 = vpop.f32.mrb[0].mxu0
    %v2669 = vpop.f32.mrb[0].mxu0
    %2670 = vdwg.mxu0
    %2671 = vmatprep.subr.bf16.mxu0 0
    %2672 = vmatpush1.bf16.msra.mxu0 %v2367
    %2673 = vmatprep.subr.bf16.mxu0 0
    %2674 = vmatpush1.bf16.msra.mxu0 %v2368
    %2675 = vmatprep.subr.bf16.mxu0 0
    %2676 = vmatpush1.bf16.msra.mxu0 %v2369
    %2677 = vmatprep.subr.bf16.mxu0 0
    %2678 = vmatpush1.bf16.msra.mxu0 %v2370
    %2679 = vmatprep.subr.bf16.mxu0 0
    %2680 = vmatpush1.bf16.msra.mxu0 %v2371
    %2681 = vmatprep.subr.bf16.mxu0 0
    %2682 = vmatpush1.bf16.msra.mxu0 %v2372
    %2683 = vmatprep.subr.bf16.mxu0 0
    %2684 = vmatpush1.bf16.msra.mxu0 %v2373
    %2685 = vmatprep.subr.bf16.mxu0 0
    %2686 = vmatpush1.bf16.msra.mxu0 %v2374
    %2687 = vmatprep.subr.bf16.mxu0 0
    %2688 = vmatpush1.bf16.msra.mxu0 %v2375
    %2689 = vmatprep.subr.bf16.mxu0 0
    %2690 = vmatpush1.bf16.msra.mxu0 %v2376
    %2691 = vmatprep.subr.bf16.mxu0 0
    %2692 = vmatpush1.bf16.msra.mxu0 %v2377
    %2693 = vmatprep.subr.bf16.mxu0 0
    %2694 = vmatpush1.bf16.msra.mxu0 %v2378
    %2695 = vmatprep.subr.bf16.mxu0 0
    %2696 = vmatpush1.bf16.msra.mxu0 %v2379
    %2697 = vmatprep.subr.bf16.mxu0 0
    %2698 = vmatpush1.bf16.msra.mxu0 %v2380
    %2699 = vmatprep.subr.bf16.mxu0 0
    %2700 = vmatpush1.bf16.msra.mxu0 %v2381
    %2701 = vmatprep.subr.bf16.mxu0 0
    %2702 = vmatpush1.bf16.msra.mxu0 %v2382
    %2703 = vmatprep.mubr.bf16.mxu0 %v156
    %2704 = vmatmul.mubr.bf16.gmra.mrb[0].mxu0 %v143
    %v2705 = vpop.f32.mrb[0].mxu0
    %v2706 = vadd.f32 %v2666, %v2705
    %v2707 = vpop.f32.mrb[0].mxu0
    %v2708 = vpop.f32.mrb[0].mxu0
    %v2709 = vpop.f32.mrb[0].mxu0
    %2710 = vdwg.mxu0
    %2711 = vmatprep.subr.bf16.mxu0 0
    %2712 = vmatpush1.bf16.msra.mxu0 %v2383
    %2713 = vmatprep.subr.bf16.mxu0 0
    %2714 = vmatpush1.bf16.msra.mxu0 %v2384
    %2715 = vmatprep.subr.bf16.mxu0 0
    %2716 = vmatpush1.bf16.msra.mxu0 %v2385
    %2717 = vmatprep.subr.bf16.mxu0 0
    %2718 = vmatpush1.bf16.msra.mxu0 %v2386
    %2719 = vmatprep.subr.bf16.mxu0 0
    %2720 = vmatpush1.bf16.msra.mxu0 %v2387
    %2721 = vmatprep.subr.bf16.mxu0 0
    %2722 = vmatpush1.bf16.msra.mxu0 %v2388
    %2723 = vmatprep.subr.bf16.mxu0 0
    %2724 = vmatpush1.bf16.msra.mxu0 %v2389
    %2725 = vmatprep.subr.bf16.mxu0 0
    %2726 = vmatpush1.bf16.msra.mxu0 %v2390
    %2727 = vmatprep.subr.bf16.mxu0 0
    %2728 = vmatpush1.bf16.msra.mxu0 %v2391
    %2729 = vmatprep.subr.bf16.mxu0 0
    %2730 = vmatpush1.bf16.msra.mxu0 %v2392
    %2731 = vmatprep.subr.bf16.mxu0 0
    %2732 = vmatpush1.bf16.msra.mxu0 %v2393
    %2733 = vmatprep.subr.bf16.mxu0 0
    %2734 = vmatpush1.bf16.msra.mxu0 %v2394
    %2735 = vmatprep.subr.bf16.mxu0 0
    %2736 = vmatpush1.bf16.msra.mxu0 %v2395
    %2737 = vmatprep.subr.bf16.mxu0 0
    %2738 = vmatpush1.bf16.msra.mxu0 %v2396
    %2739 = vmatprep.subr.bf16.mxu0 0
    %2740 = vmatpush1.bf16.msra.mxu0 %v2397
    %2741 = vmatprep.subr.bf16.mxu0 0
    %2742 = vmatpush1.bf16.msra.mxu0 %v2398
    %2743 = vmatprep.mubr.bf16.mxu0 %v158
    %2744 = vmatmul.mubr.bf16.gmra.mrb[0].mxu0 %v157
    %v2745 = vpop.f32.mrb[0].mxu0
    %v2746 = vadd.f32 %v2706, %v2745
    %v2747 = vpop.f32.mrb[0].mxu0
    %v2748 = vpop.f32.mrb[0].mxu0
    %v2749 = vpop.f32.mrb[0].mxu0
    %2750 = vdwg.mxu0
    %2751 = vmatprep.subr.bf16.mxu0 0
    %2752 = vmatpush1.bf16.msra.mxu0 %v2399
    %2753 = vmatprep.subr.bf16.mxu0 0
    %2754 = vmatpush1.bf16.msra.mxu0 %v2400
    %2755 = vmatprep.subr.bf16.mxu0 0
    %2756 = vmatpush1.bf16.msra.mxu0 %v2401
    %2757 = vmatprep.subr.bf16.mxu0 0
    %2758 = vmatpush1.bf16.msra.mxu0 %v2402
    %2759 = vmatprep.subr.bf16.mxu0 0
    %2760 = vmatpush1.bf16.msra.mxu0 %v2403
    %2761 = vmatprep.subr.bf16.mxu0 0
    %2762 = vmatpush1.bf16.msra.mxu0 %v2404
    %2763 = vmatprep.subr.bf16.mxu0 0
    %2764 = vmatpush1.bf16.msra.mxu0 %v2405
    %2765 = vmatprep.subr.bf16.mxu0 0
    %2766 = vmatpush1.bf16.msra.mxu0 %v2406
    %2767 = vmatprep.subr.bf16.mxu0 0
    %2768 = vmatpush1.bf16.msra.mxu0 %v2407
    %2769 = vmatprep.subr.bf16.mxu0 0
    %2770 = vmatpush1.bf16.msra.mxu0 %v2408
    %2771 = vmatprep.subr.bf16.mxu0 0
    %2772 = vmatpush1.bf16.msra.mxu0 %v2409
    %2773 = vmatprep.subr.bf16.mxu0 0
    %2774 = vmatpush1.bf16.msra.mxu0 %v2410
    %2775 = vmatprep.subr.bf16.mxu0 0
    %2776 = vmatpush1.bf16.msra.mxu0 %v2411
    %2777 = vmatprep.subr.bf16.mxu0 0
    %2778 = vmatpush1.bf16.msra.mxu0 %v2412
    %2779 = vmatprep.subr.bf16.mxu0 0
    %2780 = vmatpush1.bf16.msra.mxu0 %v2413
    %2781 = vmatprep.subr.bf16.mxu0 0
    %2782 = vmatpush1.bf16.msra.mxu0 %v2414
    %2783 = vmatprep.mubr.bf16.mxu0 %v188
    %2784 = vmatmul.mubr.bf16.gmra.mrb[0].mxu0 %v175
    %v2785 = vpop.f32.mrb[0].mxu0
    %v2786 = vadd.f32 %v2746, %v2785
    %v2787 = vpop.f32.mrb[0].mxu0
    %v2788 = vpop.f32.mrb[0].mxu0
    %v2789 = vpop.f32.mrb[0].mxu0
    %2790 = vdwg.mxu0
    %2791 = vmatprep.subr.bf16.mxu0 0
    %2792 = vmatpush1.bf16.msra.mxu0 %v2415
    %2793 = vmatprep.subr.bf16.mxu0 0
    %2794 = vmatpush1.bf16.msra.mxu0 %v2416
    %2795 = vmatprep.subr.bf16.mxu0 0
    %2796 = vmatpush1.bf16.msra.mxu0 %v2417
    %2797 = vmatprep.subr.bf16.mxu0 0
    %2798 = vmatpush1.bf16.msra.mxu0 %v2418
    %2799 = vmatprep.subr.bf16.mxu0 0
    %2800 = vmatpush1.bf16.msra.mxu0 %v2419
    %2801 = vmatprep.subr.bf16.mxu0 0
    %2802 = vmatpush1.bf16.msra.mxu0 %v2420
    %2803 = vmatprep.subr.bf16.mxu0 0
    %2804 = vmatpush1.bf16.msra.mxu0 %v2421
    %2805 = vmatprep.subr.bf16.mxu0 0
    %2806 = vmatpush1.bf16.msra.mxu0 %v2422
    %2807 = vmatprep.subr.bf16.mxu0 0
    %2808 = vmatpush1.bf16.msra.mxu0 %v2423
    %2809 = vmatprep.subr.bf16.mxu0 0
    %2810 = vmatpush1.bf16.msra.mxu0 %v2424
    %2811 = vmatprep.subr.bf16.mxu0 0
    %2812 = vmatpush1.bf16.msra.mxu0 %v2425
    %2813 = vmatprep.subr.bf16.mxu0 0
    %2814 = vmatpush1.bf16.msra.mxu0 %v2426
    %2815 = vmatprep.subr.bf16.mxu0 0
    %2816 = vmatpush1.bf16.msra.mxu0 %v2427
    %2817 = vmatprep.subr.bf16.mxu0 0
    %2818 = vmatpush1.bf16.msra.mxu0 %v2428
    %2819 = vmatprep.subr.bf16.mxu0 0
    %2820 = vmatpush1.bf16.msra.mxu0 %v2429
    %2821 = vmatprep.subr.bf16.mxu0 0
    %2822 = vmatpush1.bf16.msra.mxu0 %v2430
    %2823 = vmatprep.mubr.bf16.mxu0 %v190
    %2824 = vmatmul.mubr.bf16.gmra.mrb[0].mxu0 %v189
    %v2825 = vpop.f32.mrb[0].mxu0
    %v2826 = vadd.f32 %v2786, %v2825
    %v2827 = vpop.f32.mrb[0].mxu0
    %v2828 = vpop.f32.mrb[0].mxu0
    %v2829 = vpop.f32.mrb[0].mxu0
    %2830 = vdwg.mxu0
    %2831 = vmatprep.subr.bf16.mxu0 0
    %2832 = vmatpush1.bf16.msra.mxu0 %v2431
    %2833 = vmatprep.subr.bf16.mxu0 0
    %2834 = vmatpush1.bf16.msra.mxu0 %v2432
    %2835 = vmatprep.subr.bf16.mxu0 0
    %2836 = vmatpush1.bf16.msra.mxu0 %v2433
    %2837 = vmatprep.subr.bf16.mxu0 0
    %2838 = vmatpush1.bf16.msra.mxu0 %v2434
    %2839 = vmatprep.subr.bf16.mxu0 0
    %2840 = vmatpush1.bf16.msra.mxu0 %v2435
    %2841 = vmatprep.subr.bf16.mxu0 0
    %2842 = vmatpush1.bf16.msra.mxu0 %v2436
    %2843 = vmatprep.subr.bf16.mxu0 0
    %2844 = vmatpush1.bf16.msra.mxu0 %v2437
    %2845 = vmatprep.subr.bf16.mxu0 0
    %2846 = vmatpush1.bf16.msra.mxu0 %v2438
    %2847 = vmatprep.subr.bf16.mxu0 0
    %2848 = vmatpush1.bf16.msra.mxu0 %v2439
    %2849 = vmatprep.subr.bf16.mxu0 0
    %2850 = vmatpush1.bf16.msra.mxu0 %v2440
    %2851 = vmatprep.subr.bf16.mxu0 0
    %2852 = vmatpush1.bf16.msra.mxu0 %v2441
    %2853 = vmatprep.subr.bf16.mxu0 0
    %2854 = vmatpush1.bf16.msra.mxu0 %v2442
    %2855 = vmatprep.subr.bf16.mxu0 0
    %2856 = vmatpush1.bf16.msra.mxu0 %v2443
    %2857 = vmatprep.subr.bf16.mxu0 0
    %2858 = vmatpush1.bf16.msra.mxu0 %v2444
    %2859 = vmatprep.subr.bf16.mxu0 0
    %2860 = vmatpush1.bf16.msra.mxu0 %v2445
    %2861 = vmatprep.subr.bf16.mxu0 0
    %2862 = vmatpush1.bf16.msra.mxu0 %v2446
    %2863 = vmatprep.mubr.bf16.mxu0 %v220
    %2864 = vmatmul.mubr.bf16.gmra.mrb[0].mxu0 %v207
    %v2865 = vpop.f32.mrb[0].mxu0
    %v2866 = vadd.f32 %v2826, %v2865
    %v2867 = vpop.f32.mrb[0].mxu0
    %v2868 = vpop.f32.mrb[0].mxu0
    %v2869 = vpop.f32.mrb[0].mxu0
    %2870 = vdwg.mxu0
    %2871 = vmatprep.subr.bf16.mxu0 0
    %2872 = vmatpush1.bf16.msra.mxu0 %v2447
    %2873 = vmatprep.subr.bf16.mxu0 0
    %2874 = vmatpush1.bf16.msra.mxu0 %v2448
    %2875 = vmatprep.subr.bf16.mxu0 0
    %2876 = vmatpush1.bf16.msra.mxu0 %v2449
    %2877 = vmatprep.subr.bf16.mxu0 0
    %2878 = vmatpush1.bf16.msra.mxu0 %v2450
    %2879 = vmatprep.subr.bf16.mxu0 0
    %2880 = vmatpush1.bf16.msra.mxu0 %v2451
    %2881 = vmatprep.subr.bf16.mxu0 0
    %2882 = vmatpush1.bf16.msra.mxu0 %v2452
    %2883 = vmatprep.subr.bf16.mxu0 0
    %2884 = vmatpush1.bf16.msra.mxu0 %v2453
    %2885 = vmatprep.subr.bf16.mxu0 0
    %2886 = vmatpush1.bf16.msra.mxu0 %v2454
    %2887 = vmatprep.subr.bf16.mxu0 0
    %2888 = vmatpush1.bf16.msra.mxu0 %v2455
    %2889 = vmatprep.subr.bf16.mxu0 0
    %2890 = vmatpush1.bf16.msra.mxu0 %v2456
    %2891 = vmatprep.subr.bf16.mxu0 0
    %2892 = vmatpush1.bf16.msra.mxu0 %v2457
    %2893 = vmatprep.subr.bf16.mxu0 0
    %2894 = vmatpush1.bf16.msra.mxu0 %v2458
    %2895 = vmatprep.subr.bf16.mxu0 0
    %2896 = vmatpush1.bf16.msra.mxu0 %v2459
    %2897 = vmatprep.subr.bf16.mxu0 0
    %2898 = vmatpush1.bf16.msra.mxu0 %v2460
    %2899 = vmatprep.subr.bf16.mxu0 0
    %2900 = vmatpush1.bf16.msra.mxu0 %v2461
    %2901 = vmatprep.subr.bf16.mxu0 0
    %2902 = vmatpush1.bf16.msra.mxu0 %v2462
    %2903 = vmatprep.mubr.bf16.mxu0 %v222
    %2904 = vmatmul.mubr.bf16.gmra.mrb[0].mxu0 %v221
    %v2905 = vpop.f32.mrb[0].mxu0
    %v2906 = vadd.f32 %v2866, %v2905
    %v2907 = vpop.f32.mrb[0].mxu0
    %v2908 = vpop.f32.mrb[0].mxu0
    %v2909 = vpop.f32.mrb[0].mxu0
    %2910 = vdwg.mxu0
    %2911 = vst [vmem:[#allocation10] sm:$0xff] %v2906
    // Predicated region
    $region34: #{tpu_custom_call.1} parent=1 // pred_check
      _
    $region35: #{tpu_custom_call.1} parent=1 // pred_check_branch
      %2913 = sbr.rel (0) target = $region37
    $region36: #{tpu_custom_call.1} parent=1 // pred_region
      %s2915 = ssub.s32 128, 128
      %2916 = vsyncadd [#allocation4], %s2915
      %s2918 = sshll.u32 [#allocation10], 4
      %s2919 = int_to_ptr.vmem [resolvable:$true] %s2918
      %2921 = dma.vmem_to_hbm [thread:$0]  %s2919, 128, %s4, [#allocation4]
    $region37: #{tpu_custom_call.1} parent=1 // pred_fallthru
      _
    // Predicated region
    $region38: #{tpu_custom_call.1} parent=1 // pred_check
      _
    $region39: #{tpu_custom_call.1} parent=1 // pred_check_branch
      %2923 = sbr.rel (0) target = $region41
    $region40: #{tpu_custom_call.1} parent=1 // pred_region
      %2924 = dma.done [#allocation4], 128
    $region41: #{tpu_custom_call.1} parent=1 // pred_fallthru
      _
    %2925 = vsyncpa [#allocation3], 1
    %2926 = vsyncpa [#allocation6], 1
    %2927 = vsyncpa [#allocation9], 1
    %2928 = vsyncpa [#allocation4], 1

</llo_original>
